<compile_context>
chip_gen: v7x
topology: tpu7x:2x2x1
jax: 0.10.0
libtpu: 0.0.40
codegen_flags: <defaults>
</compile_context>

<pallas_src>
import jax
import jax.numpy as jnp
from jax import lax
from jax.experimental import pallas as pl
from jax.experimental.pallas import tpu as pltpu

# ------------------------- small, module-consistent config ------------------
# (the reference module requires n_frames * window_size == n_samples so that
#  result.view(batch, -1, n_samples) yields a single chunk per batch element)
BATCH = 4
CONTROL_PLANE_DIM = 16
HIDDEN_DIM = 32
WINDOW_SIZE = 256
N_FRAMES = 8
N_SAMPLES = N_FRAMES * WINDOW_SIZE          # 2048
MAX_ACTIVE = 16                             # sparsify() keep-k
BATCH_PER_BLOCK = 2                         # batch rows per grid step
ROWS_PER_BLOCK = N_FRAMES * BATCH_PER_BLOCK  # 16 (frame-major, batch-minor)


# ------------------------------- Pallas kernel -------------------------------
def _physical_model_kernel(cp_ref,      # (1, F*Bblk, C)  sparsified control, frame-major
                           w_cih_ref,   # (C, H)          fused in_projection∘W_ih^T
                           w_hh_ref,    # (H, H)          rnn.weight_hh_l0.T
                           w_out_ref,   # (H, W)          out_projection.weight.T
                           out_ref):    # (1, F*Bblk, W)  sin(out_projection(rnn(...)))
    # relu(sparsify(control)) — top-k sparsify happened in the wrapper
    cp = jnp.maximum(cp_ref[0], 0.0)                                        # (F*Bb, C)

    # fused in_projection + RNN input projection (both bias-free, exact fold):
    #   x_t @ W_ih^T == (control @ W_in^T) @ W_ih^T == control @ (W_in^T W_ih^T)
    xih = jnp.dot(cp, w_cih_ref[...], preferred_element_type=jnp.float32)   # (F*Bb, H)
    w_hh = w_hh_ref[...]                                                    # (H, H)

    # sequential tanh RNN, vectorized over the block's batch rows:
    #   h_t = tanh(x_t @ W_ih^T + h_{t-1} @ W_hh^T), bias-free, h_0 = 0
    h = jnp.zeros((BATCH_PER_BLOCK, HIDDEN_DIM), jnp.float32)
    hs = []
    for t in range(N_FRAMES):                       # few static frames -> unrolled
        x_t = xih[t * BATCH_PER_BLOCK:(t + 1) * BATCH_PER_BLOCK, :]         # (Bb, H)
        h = jnp.tanh(x_t + jnp.dot(h, w_hh, preferred_element_type=jnp.float32))
        hs.append(h)
    h_all = jnp.concatenate(hs, axis=0)                                     # (F*Bb, H)

    # out_projection (no bias) + sin, single lane-dense (16, 32) @ (32, 256)
    out = jnp.dot(h_all, w_out_ref[...], preferred_element_type=jnp.float32)
    out_ref[0] = jnp.sin(out)


def run_physical_model(cp_blocks, w_cih, w_hh_t, w_out_t):
    """cp_blocks: (n_blocks, F*Bblk, C) frame-major within each block."""
    n_blocks = cp_blocks.shape[0]
    return pl.pallas_call(
        _physical_model_kernel,
        out_shape=jax.ShapeDtypeStruct((n_blocks, ROWS_PER_BLOCK, WINDOW_SIZE),
                                       jnp.float32),
        grid=(n_blocks,),
        in_specs=[
            pl.BlockSpec((1, ROWS_PER_BLOCK, CONTROL_PLANE_DIM), lambda i: (i, 0, 0)),
            # weights: full array, same block every step -> stay resident in VMEM
            pl.BlockSpec((CONTROL_PLANE_DIM, HIDDEN_DIM), lambda i: (0, 0)),
            pl.BlockSpec((HIDDEN_DIM, HIDDEN_DIM), lambda i: (0, 0)),
            pl.BlockSpec((HIDDEN_DIM, WINDOW_SIZE), lambda i: (0, 0)),
        ],
        out_specs=pl.BlockSpec((1, ROWS_PER_BLOCK, WINDOW_SIZE), lambda i: (i, 0, 0)),
        compiler_params=pltpu.CompilerParams(dimension_semantics=("parallel",)),
    )(cp_blocks, w_cih, w_hh_t, w_out_t)


# --------------------------------- JAX glue ----------------------------------
def sparsify_topk(x, k):
    """Keep the k largest (signed) entries of a flat vector, zero the rest.
    NOTE: assumes the reference sparsify selects by signed value (torch.topk
    default); a relu follows, so only positive survivors matter anyway."""
    vals, idx = lax.top_k(x, k)
    return jnp.zeros_like(x).at[idx].set(vals)


def physical_model_forward(params, control):
    """control: (batch, control_plane_dim, n_frames) — as in the PyTorch module."""
    b = control.shape[0]
    assert b % BATCH_PER_BLOCK == 0

    # permute(0, 2, 1) -> (B, F, C), then sparsify over flattened (F*C) per batch
    x = jnp.transpose(control, (0, 2, 1)).reshape(b, -1)
    x = jax.vmap(lambda v: sparsify_topk(v, MAX_ACTIVE))(x)
    x = x.reshape(b, N_FRAMES, CONTROL_PLANE_DIM)          # relu happens in-kernel

    # group the batch into blocks, frame-major within a block so each RNN time
    # step reads a contiguous (BATCH_PER_BLOCK, H) slab
    nb = b // BATCH_PER_BLOCK
    xb = x.reshape(nb, BATCH_PER_BLOCK, N_FRAMES, CONTROL_PLANE_DIM)
    xb = jnp.transpose(xb, (0, 2, 1, 3)).reshape(nb, ROWS_PER_BLOCK, CONTROL_PLANE_DIM)

    # fold in_projection with the RNN input matrix (exact: both bias-free)
    w_cih = jnp.dot(params['w_in_t'], params['w_ih_t'],
                    precision=lax.Precision.HIGHEST)        # (C, H)

    out = run_physical_model(xb, w_cih, params['w_hh_t'], params['w_out_t'])

    # undo the (block, frame, batch-in-block) layout -> (B, F, W)
    out = out.reshape(nb, N_FRAMES, BATCH_PER_BLOCK, WINDOW_SIZE)
    out = jnp.transpose(out, (0, 2, 1, 3)).reshape(b, N_FRAMES * WINDOW_SIZE)
    # result.view(batch, -1, n_samples); sin already applied (elementwise, order-free)
    return out.reshape(b, -1, N_SAMPLES)


def physical_model_reference(params, control):
    """Pure-JAX reference of the PyTorch forward (for a correctness check)."""
    b = control.shape[0]
    x = jnp.transpose(control, (0, 2, 1)).reshape(b, -1)
    x = jax.vmap(lambda v: sparsify_topk(v, MAX_ACTIVE))(x)
    x = jnp.maximum(x.reshape(b, N_FRAMES, CONTROL_PLANE_DIM), 0.0)
    proj = jnp.dot(x, params['w_in_t'], precision=lax.Precision.HIGHEST)    # (B,F,W)

    def step(h, x_t):
        h = jnp.tanh(jnp.dot(x_t, params['w_ih_t'], precision=lax.Precision.HIGHEST)
                     + jnp.dot(h, params['w_hh_t'], precision=lax.Precision.HIGHEST))
        return h, h

    h0 = jnp.zeros((b, HIDDEN_DIM), jnp.float32)
    _, hs = lax.scan(step, h0, jnp.transpose(proj, (1, 0, 2)))              # (F,B,H)
    hs = jnp.transpose(hs, (1, 0, 2))                                       # (B,F,H)
    out = jnp.dot(hs, params['w_out_t'], precision=lax.Precision.HIGHEST)   # (B,F,W)
    return jnp.sin(out.reshape(b, -1, N_SAMPLES))


# ----------------------------- deterministic params --------------------------
def init_params(key):
    ks = jax.random.split(key, 4)
    b_in = 1.0 / (CONTROL_PLANE_DIM ** 0.5)     # nn.Linear(C, W) init bound
    b_rnn = 1.0 / (HIDDEN_DIM ** 0.5)           # nn.RNN / nn.Linear(H, W) bound
    w_in_t = jax.random.uniform(ks[0], (CONTROL_PLANE_DIM, WINDOW_SIZE),
                                jnp.float32, -b_in, b_in)       # in_projection.weight.T
    w_ih_t = jax.random.uniform(ks[1], (WINDOW_SIZE, HIDDEN_DIM),
                                jnp.float32, -b_rnn, b_rnn)     # rnn.weight_ih_l0.T
    w_hh_t = jax.random.uniform(ks[2], (HIDDEN_DIM, HIDDEN_DIM),
                                jnp.float32, -b_rnn, b_rnn)     # rnn.weight_hh_l0.T
    w_out_t = jax.random.uniform(ks[3], (HIDDEN_DIM, WINDOW_SIZE),
                                 jnp.float32, -b_rnn, b_rnn)    # out_projection.weight.T
    return dict(w_in_t=w_in_t, w_ih_t=w_ih_t, w_hh_t=w_hh_t, w_out_t=w_out_t)


if __name__ == "__main__":
    key = jax.random.PRNGKey(0)
    pk, ck = jax.random.split(key)
    params = init_params(pk)
    control = jax.random.normal(
        ck, (BATCH, CONTROL_PLANE_DIM, N_FRAMES), jnp.float32)

    out = jax.jit(physical_model_forward)(params, control)
    out = jax.block_until_ready(out)

    assert out.shape == (BATCH, 1, N_SAMPLES)
    assert bool(jnp.all(jnp.isfinite(out)))

    ref = physical_model_reference(params, control)
    max_err = float(jnp.max(jnp.abs(out - ref)))
    assert max_err < 1e-2, f"mismatch vs reference: {max_err}"

    print("KERNEL_OK")
</pallas_src>

<mosaic_0001>
module attributes {stable_mosaic.version = 11 : i64} {
  func.func @_physical_model_kernel(%arg0: i32, %arg1: memref<1x16x16xf32, #tpu.memory_space<vmem>>, %arg2: memref<16x32xf32, #tpu.memory_space<vmem>>, %arg3: memref<32x32xf32, #tpu.memory_space<vmem>>, %arg4: memref<32x256xf32, #tpu.memory_space<vmem>>, %arg5: memref<1x16x256xf32, #tpu.memory_space<vmem>>) attributes {dimension_semantics = [#tpu.dimension_semantics<parallel>], iteration_bounds = array<i64: 2>, scalar_prefetch = 0 : i64, scratch_operands = 0 : i64, tpu.core_type = #tpu.core_type<tc>, window_params = [{transform_indices = @transform_0, window_bounds = array<i64: 1, 16, 16>}, {pipeline_mode = #tpu.pipeline_mode<synchronous>, transform_indices = @transform_1, window_bounds = array<i64: 16, 32>}, {pipeline_mode = #tpu.pipeline_mode<synchronous>, transform_indices = @transform_2, window_bounds = array<i64: 32, 32>}, {pipeline_mode = #tpu.pipeline_mode<synchronous>, transform_indices = @transform_3, window_bounds = array<i64: 32, 256>}, {transform_indices = @transform_4, window_bounds = array<i64: 1, 16, 256>}]} {
    %c0 = arith.constant 0 : index
    %c0_0 = arith.constant 0 : index
    %c0_1 = arith.constant 0 : index
    %0 = vector.load %arg1[%c0, %c0_0, %c0_1] : memref<1x16x16xf32, #tpu.memory_space<vmem>>, vector<1x16x16xf32>
    %1 = vector.shape_cast %0 : vector<1x16x16xf32> to vector<16x16xf32>
    %cst = arith.constant 0.000000e+00 : f32
    %2 = vector.broadcast %cst : f32 to vector<16x16xf32>
    %3 = arith.maximumf %1, %2 : vector<16x16xf32>
    %c0_2 = arith.constant 0 : index
    %c0_3 = arith.constant 0 : index
    %4 = vector.load %arg2[%c0_2, %c0_3] : memref<16x32xf32, #tpu.memory_space<vmem>>, vector<16x32xf32>
    %cst_4 = arith.constant dense<0.000000e+00> : vector<16x32xf32>
    %5 = tpu.matmul %3, %4, %cst_4 {dimension_numbers = #tpu.dot_dimension_numbers<[1], [0], [0], [1], [0, 0, 1, 1], [], []>} : vector<16x16xf32>, vector<16x32xf32>, vector<16x32xf32> -> vector<16x32xf32>
    %c0_5 = arith.constant 0 : index
    %c0_6 = arith.constant 0 : index
    %6 = vector.load %arg3[%c0_5, %c0_6] : memref<32x32xf32, #tpu.memory_space<vmem>>, vector<32x32xf32>
    %cst_7 = arith.constant 0.000000e+00 : f32
    %7 = vector.broadcast %cst_7 : f32 to vector<2x32xf32>
    %8 = vector.extract_strided_slice %5 {offsets = [0, 0], sizes = [2, 32], strides = [1, 1]} : vector<16x32xf32> to vector<2x32xf32>
    %cst_8 = arith.constant dense<0.000000e+00> : vector<2x32xf32>
    %9 = tpu.matmul %7, %6, %cst_8 {dimension_numbers = #tpu.dot_dimension_numbers<[1], [0], [0], [1], [0, 0, 1, 1], [], []>} : vector<2x32xf32>, vector<32x32xf32>, vector<2x32xf32> -> vector<2x32xf32>
    %10 = arith.addf %8, %9 : vector<2x32xf32>
    %11 = math.tanh %10 : vector<2x32xf32>
    %12 = vector.extract_strided_slice %5 {offsets = [2, 0], sizes = [2, 32], strides = [1, 1]} : vector<16x32xf32> to vector<2x32xf32>
    %cst_9 = arith.constant dense<0.000000e+00> : vector<2x32xf32>
    %13 = tpu.matmul %11, %6, %cst_9 {dimension_numbers = #tpu.dot_dimension_numbers<[1], [0], [0], [1], [0, 0, 1, 1], [], []>} : vector<2x32xf32>, vector<32x32xf32>, vector<2x32xf32> -> vector<2x32xf32>
    %14 = arith.addf %12, %13 : vector<2x32xf32>
    %15 = math.tanh %14 : vector<2x32xf32>
    %16 = vector.extract_strided_slice %5 {offsets = [4, 0], sizes = [2, 32], strides = [1, 1]} : vector<16x32xf32> to vector<2x32xf32>
    %cst_10 = arith.constant dense<0.000000e+00> : vector<2x32xf32>
    %17 = tpu.matmul %15, %6, %cst_10 {dimension_numbers = #tpu.dot_dimension_numbers<[1], [0], [0], [1], [0, 0, 1, 1], [], []>} : vector<2x32xf32>, vector<32x32xf32>, vector<2x32xf32> -> vector<2x32xf32>
    %18 = arith.addf %16, %17 : vector<2x32xf32>
    %19 = math.tanh %18 : vector<2x32xf32>
    %20 = vector.extract_strided_slice %5 {offsets = [6, 0], sizes = [2, 32], strides = [1, 1]} : vector<16x32xf32> to vector<2x32xf32>
    %cst_11 = arith.constant dense<0.000000e+00> : vector<2x32xf32>
    %21 = tpu.matmul %19, %6, %cst_11 {dimension_numbers = #tpu.dot_dimension_numbers<[1], [0], [0], [1], [0, 0, 1, 1], [], []>} : vector<2x32xf32>, vector<32x32xf32>, vector<2x32xf32> -> vector<2x32xf32>
    %22 = arith.addf %20, %21 : vector<2x32xf32>
    %23 = math.tanh %22 : vector<2x32xf32>
    %24 = vector.extract_strided_slice %5 {offsets = [8, 0], sizes = [2, 32], strides = [1, 1]} : vector<16x32xf32> to vector<2x32xf32>
    %cst_12 = arith.constant dense<0.000000e+00> : vector<2x32xf32>
    %25 = tpu.matmul %23, %6, %cst_12 {dimension_numbers = #tpu.dot_dimension_numbers<[1], [0], [0], [1], [0, 0, 1, 1], [], []>} : vector<2x32xf32>, vector<32x32xf32>, vector<2x32xf32> -> vector<2x32xf32>
    %26 = arith.addf %24, %25 : vector<2x32xf32>
    %27 = math.tanh %26 : vector<2x32xf32>
    %28 = vector.extract_strided_slice %5 {offsets = [10, 0], sizes = [2, 32], strides = [1, 1]} : vector<16x32xf32> to vector<2x32xf32>
    %cst_13 = arith.constant dense<0.000000e+00> : vector<2x32xf32>
    %29 = tpu.matmul %27, %6, %cst_13 {dimension_numbers = #tpu.dot_dimension_numbers<[1], [0], [0], [1], [0, 0, 1, 1], [], []>} : vector<2x32xf32>, vector<32x32xf32>, vector<2x32xf32> -> vector<2x32xf32>
    %30 = arith.addf %28, %29 : vector<2x32xf32>
    %31 = math.tanh %30 : vector<2x32xf32>
    %32 = vector.extract_strided_slice %5 {offsets = [12, 0], sizes = [2, 32], strides = [1, 1]} : vector<16x32xf32> to vector<2x32xf32>
    %cst_14 = arith.constant dense<0.000000e+00> : vector<2x32xf32>
    %33 = tpu.matmul %31, %6, %cst_14 {dimension_numbers = #tpu.dot_dimension_numbers<[1], [0], [0], [1], [0, 0, 1, 1], [], []>} : vector<2x32xf32>, vector<32x32xf32>, vector<2x32xf32> -> vector<2x32xf32>
    %34 = arith.addf %32, %33 : vector<2x32xf32>
    %35 = math.tanh %34 : vector<2x32xf32>
    %36 = vector.extract_strided_slice %5 {offsets = [14, 0], sizes = [2, 32], strides = [1, 1]} : vector<16x32xf32> to vector<2x32xf32>
    %cst_15 = arith.constant dense<0.000000e+00> : vector<2x32xf32>
    %37 = tpu.matmul %35, %6, %cst_15 {dimension_numbers = #tpu.dot_dimension_numbers<[1], [0], [0], [1], [0, 0, 1, 1], [], []>} : vector<2x32xf32>, vector<32x32xf32>, vector<2x32xf32> -> vector<2x32xf32>
    %38 = arith.addf %36, %37 : vector<2x32xf32>
    %39 = math.tanh %38 : vector<2x32xf32>
    %40 = tpu.concatenate %11, %15, %19, %23, %27, %31, %35, %39 in 0 : vector<2x32xf32>, vector<2x32xf32>, vector<2x32xf32>, vector<2x32xf32>, vector<2x32xf32>, vector<2x32xf32>, vector<2x32xf32>, vector<2x32xf32> -> vector<16x32xf32>
    %c0_16 = arith.constant 0 : index
    %c0_17 = arith.constant 0 : index
    %41 = vector.load %arg4[%c0_16, %c0_17] : memref<32x256xf32, #tpu.memory_space<vmem>>, vector<32x256xf32>
    %cst_18 = arith.constant dense<0.000000e+00> : vector<16x256xf32>
    %42 = tpu.matmul %40, %41, %cst_18 {dimension_numbers = #tpu.dot_dimension_numbers<[1], [0], [0], [1], [0, 0, 1, 1], [], []>} : vector<16x32xf32>, vector<32x256xf32>, vector<16x256xf32> -> vector<16x256xf32>
    %43 = math.sin %42 : vector<16x256xf32>
    %c0_19 = arith.constant 0 : index
    %c0_20 = arith.constant 0 : index
    %c0_21 = arith.constant 0 : index
    %44 = vector.load %arg5[%c0_19, %c0_20, %c0_21] : memref<1x16x256xf32, #tpu.memory_space<vmem>>, vector<1x16x256xf32>
    %45 = vector.shape_cast %44 : vector<1x16x256xf32> to vector<16x256xf32>
    %46 = vector.shape_cast %43 : vector<16x256xf32> to vector<1x16x256xf32>
    tpu.vector_store %arg5[%c0_19, %c0_20, %c0_21], %46 {strides = array<i32>} : memref<1x16x256xf32, #tpu.memory_space<vmem>>, vector<1x16x256xf32>,
    return
  }
  func.func @transform_0(%arg0: i32) -> (i32, i32, i32) {
    %c0_i32 = arith.constant 0 : i32
    %c0_i32_0 = arith.constant 0 : i32
    %c0_i32_1 = arith.constant 0 : i32
    return %arg0, %c0_i32, %c0_i32_0 : i32, i32, i32
  }
  func.func @transform_1(%arg0: i32) -> (i32, i32) {
    %c0_i32 = arith.constant 0 : i32
    %c0_i32_0 = arith.constant 0 : i32
    %c0_i32_1 = arith.constant 0 : i32
    return %c0_i32, %c0_i32_0 : i32, i32
  }
  func.func @transform_2(%arg0: i32) -> (i32, i32) {
    %c0_i32 = arith.constant 0 : i32
    %c0_i32_0 = arith.constant 0 : i32
    %c0_i32_1 = arith.constant 0 : i32
    return %c0_i32, %c0_i32_0 : i32, i32
  }
  func.func @transform_3(%arg0: i32) -> (i32, i32) {
    %c0_i32 = arith.constant 0 : i32
    %c0_i32_0 = arith.constant 0 : i32
    %c0_i32_1 = arith.constant 0 : i32
    return %c0_i32, %c0_i32_0 : i32, i32
  }
  func.func @transform_4(%arg0: i32) -> (i32, i32, i32) {
    %c0_i32 = arith.constant 0 : i32
    %c0_i32_0 = arith.constant 0 : i32
    %c0_i32_1 = arith.constant 0 : i32
    return %arg0, %c0_i32, %c0_i32_0 : i32, i32, i32
  }
}

</mosaic_0001>

<llo_original>
// kernel: physical_model_forward.1
$region0: #{physical_model_forward.1}
  #allocation0 [shape = 'u32[]', space=smem, size = 0x4, offset = 0x4, fixed_abs, tag = 'smem constant byte address 0x4 - core index']
  #allocation1 [shape = 'u32[144,128]{1,0:T(1,128)}', space=vmem, size = 0x12000, scoped, tag = 'internal scratch']
  %s0 = inlined_call_operand.vmem [shape: f32[2,16,16], index: 0, kind: input, shape index: {}]
  %s1 = inlined_call_operand.vmem [shape: f32[16,32], index: 1, kind: input, shape index: {}]
  %s2 = inlined_call_operand.vmem [shape: f32[32,32], index: 2, kind: input, shape index: {}]
  %s3 = inlined_call_operand.vmem [shape: f32[32,256], index: 3, kind: input, shape index: {}]
  %s4 = inlined_call_operand.vmem [shape: f32[2,16,256], index: 4, kind: output, shape index: {}]
  %s5 = sld [smem:[#allocation0]]
  $region49: #{physical_model_forward.1} parent=0
    _
  %s7 = ssub.s32 1, %s5
  %s8 = scalar_select 0, %s7, %s5
  loop: start=0, step=1, limit=4
  $region2: #{physical_model_forward.1} parent=0 // loop_pre_header
    _
  $region3: #{physical_model_forward.1} parent=0 // loop_header
    %s10 = sphi 0, %s14
    %p11 = scmp.ge.s32.totalorder %s10, 4
    %s20 = sphi 0, %s22
    %s23 = sphi 0, %s20
    %s24 = sphi 0, %s23
    %s40 = sphi 0, %s24
    %s44 = sphi 0, %s44
    %s46 = sphi 0, %s44
    %s47 = sphi 0, %s46
    %s61 = sphi 0, %s47
    %s65 = sphi 0, %s65
    %s67 = sphi 0, %s65
    %s68 = sphi 0, %s67
    %s82 = sphi 0, %s68
    %s86 = sphi 0, %s86
    %s88 = sphi 0, %s86
    %s89 = sphi 0, %s88
    %s103 = sphi 0, %s89
    %s109 = sphi 0, %s111
    %s112 = sphi 0, %s109
    %s113 = sphi 0, %s112
    %s129 = sphi 0, %s113
  $region4: #{physical_model_forward.1} parent=0 // loop_header_branch
    %13 = sbr.rel (%p11) target = $region8
  $region5: #{physical_model_forward.1} parent=0 // loop_body
    %s15 = ssub.s32 %s10, 1
    %s16 = ssub.s32 %s10, 2
    %s17 = sadd.s32 %s10, 1
    %s18 = ssub.s32 %s10, %s17
    %p19 = scmp.eq.s32.totalorder %s18, 0
    %s21 = sadd.s32 %s20, 1
    %s22 = scalar_select %p19, %s20, %s21
    %p25 = pneg %p19
    %p26 = scmp.eq.s32.totalorder %s10, 1
    %p27 = por %p25, %p26
    %p28 = scmp.ne.s32.totalorder %s20, %s23
    %p29 = scmp.eq.s32.totalorder %s10, 0
    %p30 = por %p28, %p29
    %p31 = scmp.ne.s32.totalorder %s20, %s23
    %p32 = scmp.eq.s32.totalorder %s15, 1
    %p33 = por %p31, %p32
    %p34 = scmp.ne.s32.totalorder %s23, %s24
    %p35 = scmp.eq.s32.totalorder %s15, 0
    %p36 = por %p34, %p35
    %p37 = scmp.ne.s32.totalorder %s23, %s24
    %p38 = scmp.eq.s32.totalorder %s16, 1
    %p39 = por %p37, %p38
    %p41 = scmp.ne.s32.totalorder %s24, %s40
    %p42 = scmp.eq.s32.totalorder %s16, 0
    %p43 = por %p41, %p42
    %s45 = sadd.s32 %s44, 1
    %p48 = scmp.eq.s32.totalorder %s10, 1
    %p49 = scmp.ne.s32.totalorder %s44, %s46
    %p50 = scmp.eq.s32.totalorder %s10, 0
    %p51 = por %p49, %p50
    %p52 = scmp.ne.s32.totalorder %s44, %s46
    %p53 = scmp.eq.s32.totalorder %s15, 1
    %p54 = por %p52, %p53
    %p55 = scmp.ne.s32.totalorder %s46, %s47
    %p56 = scmp.eq.s32.totalorder %s15, 0
    %p57 = por %p55, %p56
    %p58 = scmp.ne.s32.totalorder %s46, %s47
    %p59 = scmp.eq.s32.totalorder %s16, 1
    %p60 = por %p58, %p59
    %p62 = scmp.ne.s32.totalorder %s47, %s61
    %p63 = scmp.eq.s32.totalorder %s16, 0
    %p64 = por %p62, %p63
    %s66 = sadd.s32 %s65, 1
    %p69 = scmp.eq.s32.totalorder %s10, 1
    %p70 = scmp.ne.s32.totalorder %s65, %s67
    %p71 = scmp.eq.s32.totalorder %s10, 0
    %p72 = por %p70, %p71
    %p73 = scmp.ne.s32.totalorder %s65, %s67
    %p74 = scmp.eq.s32.totalorder %s15, 1
    %p75 = por %p73, %p74
    %p76 = scmp.ne.s32.totalorder %s67, %s68
    %p77 = scmp.eq.s32.totalorder %s15, 0
    %p78 = por %p76, %p77
    %p79 = scmp.ne.s32.totalorder %s67, %s68
    %p80 = scmp.eq.s32.totalorder %s16, 1
    %p81 = por %p79, %p80
    %p83 = scmp.ne.s32.totalorder %s68, %s82
    %p84 = scmp.eq.s32.totalorder %s16, 0
    %p85 = por %p83, %p84
    %s87 = sadd.s32 %s86, 1
    %p90 = scmp.eq.s32.totalorder %s10, 1
    %p91 = scmp.ne.s32.totalorder %s86, %s88
    %p92 = scmp.eq.s32.totalorder %s10, 0
    %p93 = por %p91, %p92
    %p94 = scmp.ne.s32.totalorder %s86, %s88
    %p95 = scmp.eq.s32.totalorder %s15, 1
    %p96 = por %p94, %p95
    %p97 = scmp.ne.s32.totalorder %s88, %s89
    %p98 = scmp.eq.s32.totalorder %s15, 0
    %p99 = por %p97, %p98
    %p100 = scmp.ne.s32.totalorder %s88, %s89
    %p101 = scmp.eq.s32.totalorder %s16, 1
    %p102 = por %p100, %p101
    %p104 = scmp.ne.s32.totalorder %s89, %s103
    %p105 = scmp.eq.s32.totalorder %s16, 0
    %p106 = por %p104, %p105
    %s107 = ssub.s32 %s10, %s17
    %p108 = scmp.eq.s32.totalorder %s107, 0
    %s110 = sadd.s32 %s109, 1
    %s111 = scalar_select %p108, %s109, %s110
    %p114 = pneg %p108
    %p115 = scmp.eq.s32.totalorder %s10, 1
    %p116 = por %p114, %p115
    %p117 = scmp.ne.s32.totalorder %s109, %s112
    %p118 = scmp.eq.s32.totalorder %s10, 0
    %p119 = por %p117, %p118
    %p120 = scmp.ne.s32.totalorder %s109, %s112
    %p121 = scmp.eq.s32.totalorder %s15, 1
    %p122 = por %p120, %p121
    %p123 = scmp.ne.s32.totalorder %s112, %s113
    %p124 = scmp.eq.s32.totalorder %s15, 0
    %p125 = por %p123, %p124
    %p126 = scmp.ne.s32.totalorder %s112, %s113
    %p127 = scmp.eq.s32.totalorder %s16, 1
    %p128 = por %p126, %p127
    %p130 = scmp.ne.s32.totalorder %s113, %s129
    %p131 = scmp.eq.s32.totalorder %s16, 0
    %p132 = por %p130, %p131
    %p133 = scmp.le.s32.totalorder 1, %s10
    %p134 = scmp.lt.s32.totalorder %s10, 3
    %p135 = pnand %p133, %p134
    %p136 = pneg %p135
    // Predicated region
    $region9: #{physical_model_forward.1} parent=5 // pred_check
      _
    $region10: #{physical_model_forward.1} parent=5 // pred_check_branch
      %138 = sbr.rel (%p135) target = $region12
    $region11: #{physical_model_forward.1} parent=5 // pred_region
      %s139 = ssub.s32 %s10, 1
      // Predicated region
      $region13: #{physical_model_forward.1} parent=11 // pred_check
        %p140 = pneg %p57
      $region14: #{physical_model_forward.1} parent=11 // pred_check_branch
        %142 = sbr.rel (%p140) target = $region16
      $region15: #{physical_model_forward.1} parent=11 // pred_region
        _
      $region16: #{physical_model_forward.1} parent=11 // pred_fallthru
        _
      // Predicated region
      $region17: #{physical_model_forward.1} parent=11 // pred_check
        %p143 = pneg %p78
      $region18: #{physical_model_forward.1} parent=11 // pred_check_branch
        %145 = sbr.rel (%p143) target = $region20
      $region19: #{physical_model_forward.1} parent=11 // pred_region
        _
      $region20: #{physical_model_forward.1} parent=11 // pred_fallthru
        _
      // Predicated region
      $region21: #{physical_model_forward.1} parent=11 // pred_check
        %p146 = pneg %p99
      $region22: #{physical_model_forward.1} parent=11 // pred_check_branch
        %148 = sbr.rel (%p146) target = $region24
      $region23: #{physical_model_forward.1} parent=11 // pred_region
        _
      $region24: #{physical_model_forward.1} parent=11 // pred_fallthru
        _
    $region12: #{physical_model_forward.1} parent=5 // pred_fallthru
      _
    %p149 = scmp.lt.s32.totalorder %s10, 2
    // Predicated region
    $region25: #{physical_model_forward.1} parent=5 // pred_check
      %p150 = pneg %p149
    $region26: #{physical_model_forward.1} parent=5 // pred_check_branch
      %152 = sbr.rel (%p150) target = $region28
    $region27: #{physical_model_forward.1} parent=5 // pred_region
      // Predicated region
      $region29: #{physical_model_forward.1} parent=27 // pred_check
        %p153 = pneg %p30
      $region30: #{physical_model_forward.1} parent=27 // pred_check_branch
        %155 = sbr.rel (%p153) target = $region32
      $region31: #{physical_model_forward.1} parent=27 // pred_region
        %p156 = scmp.lt.s32.totalorder %s10, 1
        %s157 = scalar_select %p156, %s10, 1
        %s158 = smul.addr %s157, 2
        %s159 = smul.addr %s158, 8
        %s160 = scalar_lea.vmem %s0, %s159
      $region32: #{physical_model_forward.1} parent=27 // pred_fallthru
        _
    $region28: #{physical_model_forward.1} parent=5 // pred_fallthru
      _
    %p161 = scmp.le.s32.totalorder 1, %s10
    %p162 = scmp.lt.s32.totalorder %s10, 3
    %p163 = pnand %p161, %p162
    %p164 = pneg %p163
    // Predicated region
    $region33: #{physical_model_forward.1} parent=5 // pred_check
      _
    $region34: #{physical_model_forward.1} parent=5 // pred_check_branch
      %166 = sbr.rel (%p163) target = $region36
    $region35: #{physical_model_forward.1} parent=5 // pred_region
      %s167 = ssub.s32 %s10, 1
      %p168 = scmp.lt.s32.totalorder %s15, 1
      %s169 = scalar_select %p168, %s15, 1
      %s170 = smul.addr %s169, 2
      %s171 = smul.addr %s170, 8
      %s172 = scalar_lea.vmem %s0, %s171
      %p173 = pneg %p36
      %p174 = pneg %p33
      %p175 = pneg %p57
      %p176 = pneg %p54
      %p177 = pneg %p78
      %p178 = pneg %p75
      %p179 = pneg %p99
      %p180 = pneg %p96
      %p181 = pneg %p125
      %p182 = pneg %p122
      %p183 = scmp.lt.s32.totalorder %s15, 1
      %s184 = scalar_select %p183, %s15, 1
      %s185 = smul.addr %s184, 4
      %s186 = smul.addr %s185, 8
      %s187 = scalar_lea.vmem %s4, %s186
      %p188 = scmp.lt.s32.totalorder %s15, 1
      %s189 = scalar_select %p188, %s15, 1
      %s190 = smul.addr %s189, 2
      %s191 = smul.addr %s190, 8
      %s192 = scalar_lea.vmem %s0, %s191
      %p193 = scmp.lt.s32.totalorder %s15, 1
      %s194 = scalar_select %p193, %s15, 1
      %s195 = smul.addr %s194, 4
      %s196 = smul.addr %s195, 8
      %s197 = scalar_lea.vmem %s4, %s196
      %v198 = vld [vmem:[%s192] sm:$0xff]
      %v199 = vld [vmem:[%s192 + $0x8] sm:$0xff]
      %v200 = vmax.f32 %v198, 0.0
      %v201 = vmax.f32 %v199, 0.0
      %v202 = vld [vmem:[%s1] sm:$0xff]
      %v203 = vld [vmem:[%s1 + $0x8] sm:$0xff]
      %vm204 = vcmask 130048
      %v206 = vsel %vm204, %v200, 0
      %v209 = vsel %vm204, %v201, 0
      %211 = vmatprep.subr.mxu0 0.0
      %212 = vmatpush1.msra.mxu0 %v202
      %213 = vmatprep.subr.mxu0 0.0
      %214 = vmatpush1.msra.mxu0 %v203
      %215 = vmatprep.subr.mxu0 0.0
      %216 = vmatpush1.msra.mxu0 0.0
      %217 = vmatprep.subr.mxu0 0.0
      %218 = vmatpush1.msra.mxu0 0.0
      %219 = vmatprep.subr.mxu0 0.0
      %220 = vmatpush1.msra.mxu0 0.0
      %221 = vmatprep.subr.mxu0 0.0
      %222 = vmatpush1.msra.mxu0 0.0
      %223 = vmatprep.subr.mxu0 0.0
      %224 = vmatpush1.msra.mxu0 0.0
      %225 = vmatprep.subr.mxu0 0.0
      %226 = vmatpush1.msra.mxu0 0.0
      %227 = vmatprep.subr.mxu0 0.0
      %228 = vmatpush1.msra.mxu0 0.0
      %229 = vmatprep.subr.mxu0 0.0
      %230 = vmatpush1.msra.mxu0 0.0
      %231 = vmatprep.subr.mxu0 0.0
      %232 = vmatpush1.msra.mxu0 0.0
      %233 = vmatprep.subr.mxu0 0.0
      %234 = vmatpush1.msra.mxu0 0.0
      %235 = vmatprep.subr.mxu0 0.0
      %236 = vmatpush1.msra.mxu0 0.0
      %237 = vmatprep.subr.mxu0 0.0
      %238 = vmatpush1.msra.mxu0 0.0
      %239 = vmatprep.subr.mxu0 0.0
      %240 = vmatpush1.msra.mxu0 0.0
      %241 = vmatprep.subr.mxu0 0.0
      %242 = vmatpush1.msra.mxu0 0.0
      %243 = vmatprep.subr.mxu0 0.0
      %244 = vmatpush1.msra.mxu0 0.0
      %245 = vmatprep.subr.mxu0 0.0
      %246 = vmatpush1.msra.mxu0 0.0
      %247 = vmatprep.subr.mxu0 0.0
      %248 = vmatpush1.msra.mxu0 0.0
      %249 = vmatprep.subr.mxu0 0.0
      %250 = vmatpush1.msra.mxu0 0.0
      %251 = vmatprep.subr.mxu0 0.0
      %252 = vmatpush1.msra.mxu0 0.0
      %253 = vmatprep.subr.mxu0 0.0
      %254 = vmatpush1.msra.mxu0 0.0
      %255 = vmatprep.subr.mxu0 0.0
      %256 = vmatpush1.msra.mxu0 0.0
      %257 = vmatprep.subr.mxu0 0.0
      %258 = vmatpush1.msra.mxu0 0.0
      %259 = vmatprep.subr.mxu0 0.0
      %260 = vmatpush1.msra.mxu0 0.0
      %261 = vmatprep.subr.mxu0 0.0
      %262 = vmatpush1.msra.mxu0 0.0
      %263 = vmatprep.subr.mxu0 0.0
      %264 = vmatpush1.msra.mxu0 0.0
      %265 = vmatprep.subr.mxu0 0.0
      %266 = vmatpush1.msra.mxu0 0.0
      %267 = vmatprep.subr.mxu0 0.0
      %268 = vmatpush1.msra.mxu0 0.0
      %269 = vmatprep.subr.mxu0 0.0
      %270 = vmatpush1.msra.mxu0 0.0
      %271 = vmatprep.subr.mxu0 0.0
      %272 = vmatpush1.msra.mxu0 0.0
      %273 = vmatprep.subr.mxu0 0.0
      %274 = vmatpush1.msra.mxu0 0.0
      %275 = vmatprep.mubr.f32.mxu0 0.0
      %276 = vmatmul.mubr.f32.gmra.mrb[0].mxu0 %v206
      %v277 = vpop.f32.mrb[0].mxu0
      %v278 = vadd.f32 0.0, %v277
      %v279 = vpop.f32.mrb[0].mxu0
      %280 = vmatprep.mubr.f32.mxu0 0.0
      %281 = vmatmul.mubr.f32.gmra.mrb[0].mxu0 %v209
      %v282 = vpop.f32.mrb[0].mxu0
      %v283 = vadd.f32 0.0, %v282
      %v284 = vpop.f32.mrb[0].mxu0
      %285 = vdwg.mxu0
      %v286 = vld [vmem:[%s2] sm:$0xff]
      %v287 = vld [vmem:[%s2 + $0x8] sm:$0xff]
      %v288 = vld [vmem:[%s2 + $0x10] sm:$0xff]
      %v289 = vld [vmem:[%s2 + $0x18] sm:$0xff]
      %vm290 = vcmask 261120
      %v292 = vsel %vm290, 0.0, 0
      %294 = vmatprep.subr.mxu0 0.0
      %295 = vmatpush1.msra.mxu0 %v286
      %296 = vmatprep.subr.mxu0 0.0
      %297 = vmatpush1.msra.mxu0 %v287
      %298 = vmatprep.subr.mxu0 0.0
      %299 = vmatpush1.msra.mxu0 %v288
      %300 = vmatprep.subr.mxu0 0.0
      %301 = vmatpush1.msra.mxu0 %v289
      %302 = vmatprep.subr.mxu0 0.0
      %303 = vmatpush1.msra.mxu0 0.0
      %304 = vmatprep.subr.mxu0 0.0
      %305 = vmatpush1.msra.mxu0 0.0
      %306 = vmatprep.subr.mxu0 0.0
      %307 = vmatpush1.msra.mxu0 0.0
      %308 = vmatprep.subr.mxu0 0.0
      %309 = vmatpush1.msra.mxu0 0.0
      %310 = vmatprep.subr.mxu0 0.0
      %311 = vmatpush1.msra.mxu0 0.0
      %312 = vmatprep.subr.mxu0 0.0
      %313 = vmatpush1.msra.mxu0 0.0
      %314 = vmatprep.subr.mxu0 0.0
      %315 = vmatpush1.msra.mxu0 0.0
      %316 = vmatprep.subr.mxu0 0.0
      %317 = vmatpush1.msra.mxu0 0.0
      %318 = vmatprep.subr.mxu0 0.0
      %319 = vmatpush1.msra.mxu0 0.0
      %320 = vmatprep.subr.mxu0 0.0
      %321 = vmatpush1.msra.mxu0 0.0
      %322 = vmatprep.subr.mxu0 0.0
      %323 = vmatpush1.msra.mxu0 0.0
      %324 = vmatprep.subr.mxu0 0.0
      %325 = vmatpush1.msra.mxu0 0.0
      %326 = vmatprep.subr.mxu0 0.0
      %327 = vmatpush1.msra.mxu0 0.0
      %328 = vmatprep.subr.mxu0 0.0
      %329 = vmatpush1.msra.mxu0 0.0
      %330 = vmatprep.subr.mxu0 0.0
      %331 = vmatpush1.msra.mxu0 0.0
      %332 = vmatprep.subr.mxu0 0.0
      %333 = vmatpush1.msra.mxu0 0.0
      %334 = vmatprep.subr.mxu0 0.0
      %335 = vmatpush1.msra.mxu0 0.0
      %336 = vmatprep.subr.mxu0 0.0
      %337 = vmatpush1.msra.mxu0 0.0
      %338 = vmatprep.subr.mxu0 0.0
      %339 = vmatpush1.msra.mxu0 0.0
      %340 = vmatprep.subr.mxu0 0.0
      %341 = vmatpush1.msra.mxu0 0.0
      %342 = vmatprep.subr.mxu0 0.0
      %343 = vmatpush1.msra.mxu0 0.0
      %344 = vmatprep.subr.mxu0 0.0
      %345 = vmatpush1.msra.mxu0 0.0
      %346 = vmatprep.subr.mxu0 0.0
      %347 = vmatpush1.msra.mxu0 0.0
      %348 = vmatprep.subr.mxu0 0.0
      %349 = vmatpush1.msra.mxu0 0.0
      %350 = vmatprep.subr.mxu0 0.0
      %351 = vmatpush1.msra.mxu0 0.0
      %352 = vmatprep.subr.mxu0 0.0
      %353 = vmatpush1.msra.mxu0 0.0
      %354 = vmatprep.subr.mxu0 0.0
      %355 = vmatpush1.msra.mxu0 0.0
      %356 = vmatprep.subr.mxu0 0.0
      %357 = vmatpush1.msra.mxu0 0.0
      %358 = vmatprep.mubr.f32.mxu0 0.0
      %359 = vmatmul.mubr.f32.gmra.mrb[0].mxu0 %v292
      %v360 = vpop.f32.mrb[0].mxu0
      %v361 = vadd.f32 0.0, %v360
      %v362 = vpop.f32.mrb[0].mxu0
      %363 = vdwg.mxu0
      %v364 = vadd.f32 %v278, %v361
      %v365 = vtanh.pop %v364
      %v367 = vsel %vm290, %v365, 0
      %369 = vmatprep.subr.mxu0 0.0
      %370 = vmatpush1.msra.mxu0 %v286
      %371 = vmatprep.subr.mxu0 0.0
      %372 = vmatpush1.msra.mxu0 %v287
      %373 = vmatprep.subr.mxu0 0.0
      %374 = vmatpush1.msra.mxu0 %v288
      %375 = vmatprep.subr.mxu0 0.0
      %376 = vmatpush1.msra.mxu0 %v289
      %377 = vmatprep.subr.mxu0 0.0
      %378 = vmatpush1.msra.mxu0 0.0
      %379 = vmatprep.subr.mxu0 0.0
      %380 = vmatpush1.msra.mxu0 0.0
      %381 = vmatprep.subr.mxu0 0.0
      %382 = vmatpush1.msra.mxu0 0.0
      %383 = vmatprep.subr.mxu0 0.0
      %384 = vmatpush1.msra.mxu0 0.0
      %385 = vmatprep.subr.mxu0 0.0
      %386 = vmatpush1.msra.mxu0 0.0
      %387 = vmatprep.subr.mxu0 0.0
      %388 = vmatpush1.msra.mxu0 0.0
      %389 = vmatprep.subr.mxu0 0.0
      %390 = vmatpush1.msra.mxu0 0.0
      %391 = vmatprep.subr.mxu0 0.0
      %392 = vmatpush1.msra.mxu0 0.0
      %393 = vmatprep.subr.mxu0 0.0
      %394 = vmatpush1.msra.mxu0 0.0
      %395 = vmatprep.subr.mxu0 0.0
      %396 = vmatpush1.msra.mxu0 0.0
      %397 = vmatprep.subr.mxu0 0.0
      %398 = vmatpush1.msra.mxu0 0.0
      %399 = vmatprep.subr.mxu0 0.0
      %400 = vmatpush1.msra.mxu0 0.0
      %401 = vmatprep.subr.mxu0 0.0
      %402 = vmatpush1.msra.mxu0 0.0
      %403 = vmatprep.subr.mxu0 0.0
      %404 = vmatpush1.msra.mxu0 0.0
      %405 = vmatprep.subr.mxu0 0.0
      %406 = vmatpush1.msra.mxu0 0.0
      %407 = vmatprep.subr.mxu0 0.0
      %408 = vmatpush1.msra.mxu0 0.0
      %409 = vmatprep.subr.mxu0 0.0
      %410 = vmatpush1.msra.mxu0 0.0
      %411 = vmatprep.subr.mxu0 0.0
      %412 = vmatpush1.msra.mxu0 0.0
      %413 = vmatprep.subr.mxu0 0.0
      %414 = vmatpush1.msra.mxu0 0.0
      %415 = vmatprep.subr.mxu0 0.0
      %416 = vmatpush1.msra.mxu0 0.0
      %417 = vmatprep.subr.mxu0 0.0
      %418 = vmatpush1.msra.mxu0 0.0
      %419 = vmatprep.subr.mxu0 0.0
      %420 = vmatpush1.msra.mxu0 0.0
      %421 = vmatprep.subr.mxu0 0.0
      %422 = vmatpush1.msra.mxu0 0.0
      %423 = vmatprep.subr.mxu0 0.0
      %424 = vmatpush1.msra.mxu0 0.0
      %425 = vmatprep.subr.mxu0 0.0
      %426 = vmatpush1.msra.mxu0 0.0
      %427 = vmatprep.subr.mxu0 0.0
      %428 = vmatpush1.msra.mxu0 0.0
      %429 = vmatprep.subr.mxu0 0.0
      %430 = vmatpush1.msra.mxu0 0.0
      %431 = vmatprep.subr.mxu0 0.0
      %432 = vmatpush1.msra.mxu0 0.0
      %433 = vmatprep.mubr.f32.mxu0 0.0
      %434 = vmatmul.mubr.f32.gmra.mrb[0].mxu0 %v367
      %v435 = vpop.f32.mrb[0].mxu0
      %v436 = vadd.f32 0.0, %v435
      %v437 = vpop.f32.mrb[0].mxu0
      %438 = vdwg.mxu0
      %v440 = vrot.slane %v436, 6
      %v442 = vadd.f32 %v278, %v440
      %v443 = vtanh.pop %v442
      %v445 = vrot.slane %v443, 2
      %v446 = vsel %vm290, %v445, 0
      %448 = vmatprep.subr.mxu0 0.0
      %449 = vmatpush1.msra.mxu0 %v286
      %450 = vmatprep.subr.mxu0 0.0
      %451 = vmatpush1.msra.mxu0 %v287
      %452 = vmatprep.subr.mxu0 0.0
      %453 = vmatpush1.msra.mxu0 %v288
      %454 = vmatprep.subr.mxu0 0.0
      %455 = vmatpush1.msra.mxu0 %v289
      %456 = vmatprep.subr.mxu0 0.0
      %457 = vmatpush1.msra.mxu0 0.0
      %458 = vmatprep.subr.mxu0 0.0
      %459 = vmatpush1.msra.mxu0 0.0
      %460 = vmatprep.subr.mxu0 0.0
      %461 = vmatpush1.msra.mxu0 0.0
      %462 = vmatprep.subr.mxu0 0.0
      %463 = vmatpush1.msra.mxu0 0.0
      %464 = vmatprep.subr.mxu0 0.0
      %465 = vmatpush1.msra.mxu0 0.0
      %466 = vmatprep.subr.mxu0 0.0
      %467 = vmatpush1.msra.mxu0 0.0
      %468 = vmatprep.subr.mxu0 0.0
      %469 = vmatpush1.msra.mxu0 0.0
      %470 = vmatprep.subr.mxu0 0.0
      %471 = vmatpush1.msra.mxu0 0.0
      %472 = vmatprep.subr.mxu0 0.0
      %473 = vmatpush1.msra.mxu0 0.0
      %474 = vmatprep.subr.mxu0 0.0
      %475 = vmatpush1.msra.mxu0 0.0
      %476 = vmatprep.subr.mxu0 0.0
      %477 = vmatpush1.msra.mxu0 0.0
      %478 = vmatprep.subr.mxu0 0.0
      %479 = vmatpush1.msra.mxu0 0.0
      %480 = vmatprep.subr.mxu0 0.0
      %481 = vmatpush1.msra.mxu0 0.0
      %482 = vmatprep.subr.mxu0 0.0
      %483 = vmatpush1.msra.mxu0 0.0
      %484 = vmatprep.subr.mxu0 0.0
      %485 = vmatpush1.msra.mxu0 0.0
      %486 = vmatprep.subr.mxu0 0.0
      %487 = vmatpush1.msra.mxu0 0.0
      %488 = vmatprep.subr.mxu0 0.0
      %489 = vmatpush1.msra.mxu0 0.0
      %490 = vmatprep.subr.mxu0 0.0
      %491 = vmatpush1.msra.mxu0 0.0
      %492 = vmatprep.subr.mxu0 0.0
      %493 = vmatpush1.msra.mxu0 0.0
      %494 = vmatprep.subr.mxu0 0.0
      %495 = vmatpush1.msra.mxu0 0.0
      %496 = vmatprep.subr.mxu0 0.0
      %497 = vmatpush1.msra.mxu0 0.0
      %498 = vmatprep.subr.mxu0 0.0
      %499 = vmatpush1.msra.mxu0 0.0
      %500 = vmatprep.subr.mxu0 0.0
      %501 = vmatpush1.msra.mxu0 0.0
      %502 = vmatprep.subr.mxu0 0.0
      %503 = vmatpush1.msra.mxu0 0.0
      %504 = vmatprep.subr.mxu0 0.0
      %505 = vmatpush1.msra.mxu0 0.0
      %506 = vmatprep.subr.mxu0 0.0
      %507 = vmatpush1.msra.mxu0 0.0
      %508 = vmatprep.subr.mxu0 0.0
      %509 = vmatpush1.msra.mxu0 0.0
      %510 = vmatprep.subr.mxu0 0.0
      %511 = vmatpush1.msra.mxu0 0.0
      %512 = vmatprep.mubr.f32.mxu0 0.0
      %513 = vmatmul.mubr.f32.gmra.mrb[0].mxu0 %v446
      %v514 = vpop.f32.mrb[0].mxu0
      %v515 = vadd.f32 0.0, %v514
      %v516 = vpop.f32.mrb[0].mxu0
      %517 = vdwg.mxu0
      %v519 = vrot.slane %v515, 4
      %v521 = vadd.f32 %v278, %v519
      %v522 = vtanh.pop %v521
      %v524 = vrot.slane %v522, 4
      %v525 = vsel %vm290, %v524, 0
      %527 = vmatprep.subr.mxu0 0.0
      %528 = vmatpush1.msra.mxu0 %v286
      %529 = vmatprep.subr.mxu0 0.0
      %530 = vmatpush1.msra.mxu0 %v287
      %531 = vmatprep.subr.mxu0 0.0
      %532 = vmatpush1.msra.mxu0 %v288
      %533 = vmatprep.subr.mxu0 0.0
      %534 = vmatpush1.msra.mxu0 %v289
      %535 = vmatprep.subr.mxu0 0.0
      %536 = vmatpush1.msra.mxu0 0.0
      %537 = vmatprep.subr.mxu0 0.0
      %538 = vmatpush1.msra.mxu0 0.0
      %539 = vmatprep.subr.mxu0 0.0
      %540 = vmatpush1.msra.mxu0 0.0
      %541 = vmatprep.subr.mxu0 0.0
      %542 = vmatpush1.msra.mxu0 0.0
      %543 = vmatprep.subr.mxu0 0.0
      %544 = vmatpush1.msra.mxu0 0.0
      %545 = vmatprep.subr.mxu0 0.0
      %546 = vmatpush1.msra.mxu0 0.0
      %547 = vmatprep.subr.mxu0 0.0
      %548 = vmatpush1.msra.mxu0 0.0
      %549 = vmatprep.subr.mxu0 0.0
      %550 = vmatpush1.msra.mxu0 0.0
      %551 = vmatprep.subr.mxu0 0.0
      %552 = vmatpush1.msra.mxu0 0.0
      %553 = vmatprep.subr.mxu0 0.0
      %554 = vmatpush1.msra.mxu0 0.0
      %555 = vmatprep.subr.mxu0 0.0
      %556 = vmatpush1.msra.mxu0 0.0
      %557 = vmatprep.subr.mxu0 0.0
      %558 = vmatpush1.msra.mxu0 0.0
      %559 = vmatprep.subr.mxu0 0.0
      %560 = vmatpush1.msra.mxu0 0.0
      %561 = vmatprep.subr.mxu0 0.0
      %562 = vmatpush1.msra.mxu0 0.0
      %563 = vmatprep.subr.mxu0 0.0
      %564 = vmatpush1.msra.mxu0 0.0
      %565 = vmatprep.subr.mxu0 0.0
      %566 = vmatpush1.msra.mxu0 0.0
      %567 = vmatprep.subr.mxu0 0.0
      %568 = vmatpush1.msra.mxu0 0.0
      %569 = vmatprep.subr.mxu0 0.0
      %570 = vmatpush1.msra.mxu0 0.0
      %571 = vmatprep.subr.mxu0 0.0
      %572 = vmatpush1.msra.mxu0 0.0
      %573 = vmatprep.subr.mxu0 0.0
      %574 = vmatpush1.msra.mxu0 0.0
      %575 = vmatprep.subr.mxu0 0.0
      %576 = vmatpush1.msra.mxu0 0.0
      %577 = vmatprep.subr.mxu0 0.0
      %578 = vmatpush1.msra.mxu0 0.0
      %579 = vmatprep.subr.mxu0 0.0
      %580 = vmatpush1.msra.mxu0 0.0
      %581 = vmatprep.subr.mxu0 0.0
      %582 = vmatpush1.msra.mxu0 0.0
      %583 = vmatprep.subr.mxu0 0.0
      %584 = vmatpush1.msra.mxu0 0.0
      %585 = vmatprep.subr.mxu0 0.0
      %586 = vmatpush1.msra.mxu0 0.0
      %587 = vmatprep.subr.mxu0 0.0
      %588 = vmatpush1.msra.mxu0 0.0
      %589 = vmatprep.subr.mxu0 0.0
      %590 = vmatpush1.msra.mxu0 0.0
      %591 = vmatprep.mubr.f32.mxu0 0.0
      %592 = vmatmul.mubr.f32.gmra.mrb[0].mxu0 %v525
      %v593 = vpop.f32.mrb[0].mxu0
      %v594 = vadd.f32 0.0, %v593
      %v595 = vpop.f32.mrb[0].mxu0
      %596 = vdwg.mxu0
      %v598 = vrot.slane %v594, 2
      %v600 = vadd.f32 %v278, %v598
      %v601 = vtanh.pop %v600
      %v603 = vrot.slane %v601, 6
      %v604 = vsel %vm290, %v603, 0
      %606 = vmatprep.subr.mxu0 0.0
      %607 = vmatpush1.msra.mxu0 %v286
      %608 = vmatprep.subr.mxu0 0.0
      %609 = vmatpush1.msra.mxu0 %v287
      %610 = vmatprep.subr.mxu0 0.0
      %611 = vmatpush1.msra.mxu0 %v288
      %612 = vmatprep.subr.mxu0 0.0
      %613 = vmatpush1.msra.mxu0 %v289
      %614 = vmatprep.subr.mxu0 0.0
      %615 = vmatpush1.msra.mxu0 0.0
      %616 = vmatprep.subr.mxu0 0.0
      %617 = vmatpush1.msra.mxu0 0.0
      %618 = vmatprep.subr.mxu0 0.0
      %619 = vmatpush1.msra.mxu0 0.0
      %620 = vmatprep.subr.mxu0 0.0
      %621 = vmatpush1.msra.mxu0 0.0
      %622 = vmatprep.subr.mxu0 0.0
      %623 = vmatpush1.msra.mxu0 0.0
      %624 = vmatprep.subr.mxu0 0.0
      %625 = vmatpush1.msra.mxu0 0.0
      %626 = vmatprep.subr.mxu0 0.0
      %627 = vmatpush1.msra.mxu0 0.0
      %628 = vmatprep.subr.mxu0 0.0
      %629 = vmatpush1.msra.mxu0 0.0
      %630 = vmatprep.subr.mxu0 0.0
      %631 = vmatpush1.msra.mxu0 0.0
      %632 = vmatprep.subr.mxu0 0.0
      %633 = vmatpush1.msra.mxu0 0.0
      %634 = vmatprep.subr.mxu0 0.0
      %635 = vmatpush1.msra.mxu0 0.0
      %636 = vmatprep.subr.mxu0 0.0
      %637 = vmatpush1.msra.mxu0 0.0
      %638 = vmatprep.subr.mxu0 0.0
      %639 = vmatpush1.msra.mxu0 0.0
      %640 = vmatprep.subr.mxu0 0.0
      %641 = vmatpush1.msra.mxu0 0.0
      %642 = vmatprep.subr.mxu0 0.0
      %643 = vmatpush1.msra.mxu0 0.0
      %644 = vmatprep.subr.mxu0 0.0
      %645 = vmatpush1.msra.mxu0 0.0
      %646 = vmatprep.subr.mxu0 0.0
      %647 = vmatpush1.msra.mxu0 0.0
      %648 = vmatprep.subr.mxu0 0.0
      %649 = vmatpush1.msra.mxu0 0.0
      %650 = vmatprep.subr.mxu0 0.0
      %651 = vmatpush1.msra.mxu0 0.0
      %652 = vmatprep.subr.mxu0 0.0
      %653 = vmatpush1.msra.mxu0 0.0
      %654 = vmatprep.subr.mxu0 0.0
      %655 = vmatpush1.msra.mxu0 0.0
      %656 = vmatprep.subr.mxu0 0.0
      %657 = vmatpush1.msra.mxu0 0.0
      %658 = vmatprep.subr.mxu0 0.0
      %659 = vmatpush1.msra.mxu0 0.0
      %660 = vmatprep.subr.mxu0 0.0
      %661 = vmatpush1.msra.mxu0 0.0
      %662 = vmatprep.subr.mxu0 0.0
      %663 = vmatpush1.msra.mxu0 0.0
      %664 = vmatprep.subr.mxu0 0.0
      %665 = vmatpush1.msra.mxu0 0.0
      %666 = vmatprep.subr.mxu0 0.0
      %667 = vmatpush1.msra.mxu0 0.0
      %668 = vmatprep.subr.mxu0 0.0
      %669 = vmatpush1.msra.mxu0 0.0
      %670 = vmatprep.mubr.f32.mxu0 0.0
      %671 = vmatmul.mubr.f32.gmra.mrb[0].mxu0 %v604
      %v672 = vpop.f32.mrb[0].mxu0
      %v673 = vadd.f32 0.0, %v672
      %v674 = vpop.f32.mrb[0].mxu0
      %675 = vdwg.mxu0
      %v676 = vadd.f32 %v283, %v673
      %v677 = vtanh.pop %v676
      %v679 = vsel %vm290, %v677, 0
      %681 = vmatprep.subr.mxu0 0.0
      %682 = vmatpush1.msra.mxu0 %v286
      %683 = vmatprep.subr.mxu0 0.0
      %684 = vmatpush1.msra.mxu0 %v287
      %685 = vmatprep.subr.mxu0 0.0
      %686 = vmatpush1.msra.mxu0 %v288
      %687 = vmatprep.subr.mxu0 0.0
      %688 = vmatpush1.msra.mxu0 %v289
      %689 = vmatprep.subr.mxu0 0.0
      %690 = vmatpush1.msra.mxu0 0.0
      %691 = vmatprep.subr.mxu0 0.0
      %692 = vmatpush1.msra.mxu0 0.0
      %693 = vmatprep.subr.mxu0 0.0
      %694 = vmatpush1.msra.mxu0 0.0
      %695 = vmatprep.subr.mxu0 0.0
      %696 = vmatpush1.msra.mxu0 0.0
      %697 = vmatprep.subr.mxu0 0.0
      %698 = vmatpush1.msra.mxu0 0.0
      %699 = vmatprep.subr.mxu0 0.0
      %700 = vmatpush1.msra.mxu0 0.0
      %701 = vmatprep.subr.mxu0 0.0
      %702 = vmatpush1.msra.mxu0 0.0
      %703 = vmatprep.subr.mxu0 0.0
      %704 = vmatpush1.msra.mxu0 0.0
      %705 = vmatprep.subr.mxu0 0.0
      %706 = vmatpush1.msra.mxu0 0.0
      %707 = vmatprep.subr.mxu0 0.0
      %708 = vmatpush1.msra.mxu0 0.0
      %709 = vmatprep.subr.mxu0 0.0
      %710 = vmatpush1.msra.mxu0 0.0
      %711 = vmatprep.subr.mxu0 0.0
      %712 = vmatpush1.msra.mxu0 0.0
      %713 = vmatprep.subr.mxu0 0.0
      %714 = vmatpush1.msra.mxu0 0.0
      %715 = vmatprep.subr.mxu0 0.0
      %716 = vmatpush1.msra.mxu0 0.0
      %717 = vmatprep.subr.mxu0 0.0
      %718 = vmatpush1.msra.mxu0 0.0
      %719 = vmatprep.subr.mxu0 0.0
      %720 = vmatpush1.msra.mxu0 0.0
      %721 = vmatprep.subr.mxu0 0.0
      %722 = vmatpush1.msra.mxu0 0.0
      %723 = vmatprep.subr.mxu0 0.0
      %724 = vmatpush1.msra.mxu0 0.0
      %725 = vmatprep.subr.mxu0 0.0
      %726 = vmatpush1.msra.mxu0 0.0
      %727 = vmatprep.subr.mxu0 0.0
      %728 = vmatpush1.msra.mxu0 0.0
      %729 = vmatprep.subr.mxu0 0.0
      %730 = vmatpush1.msra.mxu0 0.0
      %731 = vmatprep.subr.mxu0 0.0
      %732 = vmatpush1.msra.mxu0 0.0
      %733 = vmatprep.subr.mxu0 0.0
      %734 = vmatpush1.msra.mxu0 0.0
      %735 = vmatprep.subr.mxu0 0.0
      %736 = vmatpush1.msra.mxu0 0.0
      %737 = vmatprep.subr.mxu0 0.0
      %738 = vmatpush1.msra.mxu0 0.0
      %739 = vmatprep.subr.mxu0 0.0
      %740 = vmatpush1.msra.mxu0 0.0
      %741 = vmatprep.subr.mxu0 0.0
      %742 = vmatpush1.msra.mxu0 0.0
      %743 = vmatprep.subr.mxu0 0.0
      %744 = vmatpush1.msra.mxu0 0.0
      %745 = vmatprep.mubr.f32.mxu0 0.0
      %746 = vmatmul.mubr.f32.gmra.mrb[0].mxu0 %v679
      %v747 = vpop.f32.mrb[0].mxu0
      %v748 = vadd.f32 0.0, %v747
      %v749 = vpop.f32.mrb[0].mxu0
      %750 = vdwg.mxu0
      %v752 = vrot.slane %v748, 6
      %v754 = vadd.f32 %v283, %v752
      %v755 = vtanh.pop %v754
      %v757 = vrot.slane %v755, 2
      %v758 = vsel %vm290, %v757, 0
      %760 = vmatprep.subr.mxu0 0.0
      %761 = vmatpush1.msra.mxu0 %v286
      %762 = vmatprep.subr.mxu0 0.0
      %763 = vmatpush1.msra.mxu0 %v287
      %764 = vmatprep.subr.mxu0 0.0
      %765 = vmatpush1.msra.mxu0 %v288
      %766 = vmatprep.subr.mxu0 0.0
      %767 = vmatpush1.msra.mxu0 %v289
      %768 = vmatprep.subr.mxu0 0.0
      %769 = vmatpush1.msra.mxu0 0.0
      %770 = vmatprep.subr.mxu0 0.0
      %771 = vmatpush1.msra.mxu0 0.0
      %772 = vmatprep.subr.mxu0 0.0
      %773 = vmatpush1.msra.mxu0 0.0
      %774 = vmatprep.subr.mxu0 0.0
      %775 = vmatpush1.msra.mxu0 0.0
      %776 = vmatprep.subr.mxu0 0.0
      %777 = vmatpush1.msra.mxu0 0.0
      %778 = vmatprep.subr.mxu0 0.0
      %779 = vmatpush1.msra.mxu0 0.0
      %780 = vmatprep.subr.mxu0 0.0
      %781 = vmatpush1.msra.mxu0 0.0
      %782 = vmatprep.subr.mxu0 0.0
      %783 = vmatpush1.msra.mxu0 0.0
      %784 = vmatprep.subr.mxu0 0.0
      %785 = vmatpush1.msra.mxu0 0.0
      %786 = vmatprep.subr.mxu0 0.0
      %787 = vmatpush1.msra.mxu0 0.0
      %788 = vmatprep.subr.mxu0 0.0
      %789 = vmatpush1.msra.mxu0 0.0
      %790 = vmatprep.subr.mxu0 0.0
      %791 = vmatpush1.msra.mxu0 0.0
      %792 = vmatprep.subr.mxu0 0.0
      %793 = vmatpush1.msra.mxu0 0.0
      %794 = vmatprep.subr.mxu0 0.0
      %795 = vmatpush1.msra.mxu0 0.0
      %796 = vmatprep.subr.mxu0 0.0
      %797 = vmatpush1.msra.mxu0 0.0
      %798 = vmatprep.subr.mxu0 0.0
      %799 = vmatpush1.msra.mxu0 0.0
      %800 = vmatprep.subr.mxu0 0.0
      %801 = vmatpush1.msra.mxu0 0.0
      %802 = vmatprep.subr.mxu0 0.0
      %803 = vmatpush1.msra.mxu0 0.0
      %804 = vmatprep.subr.mxu0 0.0
      %805 = vmatpush1.msra.mxu0 0.0
      %806 = vmatprep.subr.mxu0 0.0
      %807 = vmatpush1.msra.mxu0 0.0
      %808 = vmatprep.subr.mxu0 0.0
      %809 = vmatpush1.msra.mxu0 0.0
      %810 = vmatprep.subr.mxu0 0.0
      %811 = vmatpush1.msra.mxu0 0.0
      %812 = vmatprep.subr.mxu0 0.0
      %813 = vmatpush1.msra.mxu0 0.0
      %814 = vmatprep.subr.mxu0 0.0
      %815 = vmatpush1.msra.mxu0 0.0
      %816 = vmatprep.subr.mxu0 0.0
      %817 = vmatpush1.msra.mxu0 0.0
      %818 = vmatprep.subr.mxu0 0.0
      %819 = vmatpush1.msra.mxu0 0.0
      %820 = vmatprep.subr.mxu0 0.0
      %821 = vmatpush1.msra.mxu0 0.0
      %822 = vmatprep.subr.mxu0 0.0
      %823 = vmatpush1.msra.mxu0 0.0
      %824 = vmatprep.mubr.f32.mxu0 0.0
      %825 = vmatmul.mubr.f32.gmra.mrb[0].mxu0 %v758
      %v826 = vpop.f32.mrb[0].mxu0
      %v827 = vadd.f32 0.0, %v826
      %v828 = vpop.f32.mrb[0].mxu0
      %829 = vdwg.mxu0
      %v831 = vrot.slane %v827, 4
      %v833 = vadd.f32 %v283, %v831
      %v834 = vtanh.pop %v833
      %v836 = vrot.slane %v834, 4
      %v837 = vsel %vm290, %v836, 0
      %839 = vmatprep.subr.mxu0 0.0
      %840 = vmatpush1.msra.mxu0 %v286
      %841 = vmatprep.subr.mxu0 0.0
      %842 = vmatpush1.msra.mxu0 %v287
      %843 = vmatprep.subr.mxu0 0.0
      %844 = vmatpush1.msra.mxu0 %v288
      %845 = vmatprep.subr.mxu0 0.0
      %846 = vmatpush1.msra.mxu0 %v289
      %847 = vmatprep.subr.mxu0 0.0
      %848 = vmatpush1.msra.mxu0 0.0
      %849 = vmatprep.subr.mxu0 0.0
      %850 = vmatpush1.msra.mxu0 0.0
      %851 = vmatprep.subr.mxu0 0.0
      %852 = vmatpush1.msra.mxu0 0.0
      %853 = vmatprep.subr.mxu0 0.0
      %854 = vmatpush1.msra.mxu0 0.0
      %855 = vmatprep.subr.mxu0 0.0
      %856 = vmatpush1.msra.mxu0 0.0
      %857 = vmatprep.subr.mxu0 0.0
      %858 = vmatpush1.msra.mxu0 0.0
      %859 = vmatprep.subr.mxu0 0.0
      %860 = vmatpush1.msra.mxu0 0.0
      %861 = vmatprep.subr.mxu0 0.0
      %862 = vmatpush1.msra.mxu0 0.0
      %863 = vmatprep.subr.mxu0 0.0
      %864 = vmatpush1.msra.mxu0 0.0
      %865 = vmatprep.subr.mxu0 0.0
      %866 = vmatpush1.msra.mxu0 0.0
      %867 = vmatprep.subr.mxu0 0.0
      %868 = vmatpush1.msra.mxu0 0.0
      %869 = vmatprep.subr.mxu0 0.0
      %870 = vmatpush1.msra.mxu0 0.0
      %871 = vmatprep.subr.mxu0 0.0
      %872 = vmatpush1.msra.mxu0 0.0
      %873 = vmatprep.subr.mxu0 0.0
      %874 = vmatpush1.msra.mxu0 0.0
      %875 = vmatprep.subr.mxu0 0.0
      %876 = vmatpush1.msra.mxu0 0.0
      %877 = vmatprep.subr.mxu0 0.0
      %878 = vmatpush1.msra.mxu0 0.0
      %879 = vmatprep.subr.mxu0 0.0
      %880 = vmatpush1.msra.mxu0 0.0
      %881 = vmatprep.subr.mxu0 0.0
      %882 = vmatpush1.msra.mxu0 0.0
      %883 = vmatprep.subr.mxu0 0.0
      %884 = vmatpush1.msra.mxu0 0.0
      %885 = vmatprep.subr.mxu0 0.0
      %886 = vmatpush1.msra.mxu0 0.0
      %887 = vmatprep.subr.mxu0 0.0
      %888 = vmatpush1.msra.mxu0 0.0
      %889 = vmatprep.subr.mxu0 0.0
      %890 = vmatpush1.msra.mxu0 0.0
      %891 = vmatprep.subr.mxu0 0.0
      %892 = vmatpush1.msra.mxu0 0.0
      %893 = vmatprep.subr.mxu0 0.0
      %894 = vmatpush1.msra.mxu0 0.0
      %895 = vmatprep.subr.mxu0 0.0
      %896 = vmatpush1.msra.mxu0 0.0
      %897 = vmatprep.subr.mxu0 0.0
      %898 = vmatpush1.msra.mxu0 0.0
      %899 = vmatprep.subr.mxu0 0.0
      %900 = vmatpush1.msra.mxu0 0.0
      %901 = vmatprep.subr.mxu0 0.0
      %902 = vmatpush1.msra.mxu0 0.0
      %903 = vmatprep.mubr.f32.mxu0 0.0
      %904 = vmatmul.mubr.f32.gmra.mrb[0].mxu0 %v837
      %v905 = vpop.f32.mrb[0].mxu0
      %v906 = vadd.f32 0.0, %v905
      %v907 = vpop.f32.mrb[0].mxu0
      %908 = vdwg.mxu0
      %v910 = vrot.slane %v906, 2
      %v912 = vadd.f32 %v283, %v910
      %v913 = vtanh.pop %v912
      %vm914 = vcmask 1041408
      %v915 = vsel %vm914, %v365, %v443
      %vm916 = vcmask 1043456
      %v917 = vsel %vm916, %v915, %v522
      %vm918 = vcmask 1045504
      %v919 = vsel %vm918, %v917, %v601
      %v920 = vsel %vm914, %v677, %v755
      %v921 = vsel %vm916, %v920, %v834
      %v922 = vsel %vm918, %v921, %v913
      %v923 = vld [vmem:[%s3] sm:$0xff]
      %v924 = vld [vmem:[%s3 + $0x8] sm:$0xff]
      %v925 = vld [vmem:[%s3 + $0x10] sm:$0xff]
      %v926 = vld [vmem:[%s3 + $0x18] sm:$0xff]
      %v927 = vld [vmem:[%s3 + $0x20] sm:$0xff]
      %v928 = vld [vmem:[%s3 + $0x28] sm:$0xff]
      %v929 = vld [vmem:[%s3 + $0x30] sm:$0xff]
      %v930 = vld [vmem:[%s3 + $0x38] sm:$0xff]
      %v932 = vsel %vm290, %v919, 0
      %v935 = vsel %vm290, %v922, 0
      %937 = vmatprep.subr.mxu0 %v924
      %938 = vmatpush1.msra.mxu0 %v923
      %939 = vmatprep.subr.mxu0 %v926
      %940 = vmatpush1.msra.mxu0 %v925
      %941 = vmatprep.subr.mxu0 %v928
      %942 = vmatpush1.msra.mxu0 %v927
      %943 = vmatprep.subr.mxu0 %v930
      %944 = vmatpush1.msra.mxu0 %v929
      %945 = vmatprep.subr.mxu0 0.0
      %946 = vmatpush1.msra.mxu0 0.0
      %947 = vmatprep.subr.mxu0 0.0
      %948 = vmatpush1.msra.mxu0 0.0
      %949 = vmatprep.subr.mxu0 0.0
      %950 = vmatpush1.msra.mxu0 0.0
      %951 = vmatprep.subr.mxu0 0.0
      %952 = vmatpush1.msra.mxu0 0.0
      %953 = vmatprep.subr.mxu0 0.0
      %954 = vmatpush1.msra.mxu0 0.0
      %955 = vmatprep.subr.mxu0 0.0
      %956 = vmatpush1.msra.mxu0 0.0
      %957 = vmatprep.subr.mxu0 0.0
      %958 = vmatpush1.msra.mxu0 0.0
      %959 = vmatprep.subr.mxu0 0.0
      %960 = vmatpush1.msra.mxu0 0.0
      %961 = vmatprep.subr.mxu0 0.0
      %962 = vmatpush1.msra.mxu0 0.0
      %963 = vmatprep.subr.mxu0 0.0
      %964 = vmatpush1.msra.mxu0 0.0
      %965 = vmatprep.subr.mxu0 0.0
      %966 = vmatpush1.msra.mxu0 0.0
      %967 = vmatprep.subr.mxu0 0.0
      %968 = vmatpush1.msra.mxu0 0.0
      %969 = vmatprep.subr.mxu0 0.0
      %970 = vmatpush1.msra.mxu0 0.0
      %971 = vmatprep.subr.mxu0 0.0
      %972 = vmatpush1.msra.mxu0 0.0
      %973 = vmatprep.subr.mxu0 0.0
      %974 = vmatpush1.msra.mxu0 0.0
      %975 = vmatprep.subr.mxu0 0.0
      %976 = vmatpush1.msra.mxu0 0.0
      %977 = vmatprep.subr.mxu0 0.0
      %978 = vmatpush1.msra.mxu0 0.0
      %979 = vmatprep.subr.mxu0 0.0
      %980 = vmatpush1.msra.mxu0 0.0
      %981 = vmatprep.subr.mxu0 0.0
      %982 = vmatpush1.msra.mxu0 0.0
      %983 = vmatprep.subr.mxu0 0.0
      %984 = vmatpush1.msra.mxu0 0.0
      %985 = vmatprep.subr.mxu0 0.0
      %986 = vmatpush1.msra.mxu0 0.0
      %987 = vmatprep.subr.mxu0 0.0
      %988 = vmatpush1.msra.mxu0 0.0
      %989 = vmatprep.subr.mxu0 0.0
      %990 = vmatpush1.msra.mxu0 0.0
      %991 = vmatprep.subr.mxu0 0.0
      %992 = vmatpush1.msra.mxu0 0.0
      %993 = vmatprep.subr.mxu0 0.0
      %994 = vmatpush1.msra.mxu0 0.0
      %995 = vmatprep.subr.mxu0 0.0
      %996 = vmatpush1.msra.mxu0 0.0
      %997 = vmatprep.subr.mxu0 0.0
      %998 = vmatpush1.msra.mxu0 0.0
      %999 = vmatprep.subr.mxu0 0.0
      %1000 = vmatpush1.msra.mxu0 0.0
      %1001 = vmatprep.mubr.f32.mxu0 0.0
      %1002 = vmatmul.mubr.f32.gmra.mrb[0].mxu0 %v932
      %v1003 = vpop.f32.mrb[0].mxu0
      %v1004 = vadd.f32 0.0, %v1003
      %v1005 = vpop.f32.mrb[0].mxu0
      %v1006 = vadd.f32 0.0, %v1005
      %1007 = vmatprep.mubr.f32.mxu0 0.0
      %1008 = vmatmul.mubr.f32.gmra.mrb[0].mxu0 %v935
      %v1009 = vpop.f32.mrb[0].mxu0
      %v1010 = vadd.f32 0.0, %v1009
      %v1011 = vpop.f32.mrb[0].mxu0
      %v1012 = vadd.f32 0.0, %v1011
      %1013 = vdwg.mxu0
      %v1014 = vand.u32 2147483647, %v1004
      %vm1015 = vcmp.le.f32.partialorder %v1014, 0.7853982
      %vm1016 = vcmp.lt.s32.totalorder %v1004, 0
      %v1017 = vand.u32 %v1004, 2139095040
      %v1018 = vshrl.u32 %v1017, 23
      %v1019 = vsub.s32 %v1018, 127
      %v1020 = vand.u32 2147483647, %v1004
      %v1021 = vand.u32 %v1020, 8388607
      %v1022 = vor.u32 %v1021, 8388608
      %v1023 = vsub.s32 0, %v1022
      %v1024 = vadd.s32 %v1019, 1
      %vm1025 = vcmp.gt.s32.totalorder %v1024, 0
      %v1026 = vsel %vm1025, %v1024, 0
      %v1027 = vshrl.u32 %v1026, 5
      %v1028 = vand.u32 %v1026, 31
      %v1029 = vsub.s32 32, %v1028
      %v1030 = vshrl.u32 683565275, %v1029
      %v1031 = vshll.u32 683565275, %v1028
      %v1032 = vshrl.u32 2475754826, %v1029
      %v1033 = vor.u32 %v1031, %v1032
      %v1034 = vshll.u32 2475754826, %v1028
      %v1035 = vshrl.u32 2131351028, %v1029
      %v1036 = vor.u32 %v1034, %v1035
      %v1037 = vshll.u32 2131351028, %v1028
      %v1038 = vshrl.u32 2102212464, %v1029
      %v1039 = vor.u32 %v1037, %v1038
      %v1040 = vshll.u32 2102212464, %v1028
      %v1041 = vshrl.u32 920167782, %v1029
      %v1042 = vor.u32 %v1040, %v1041
      %v1043 = vshll.u32 920167782, %v1028
      %v1044 = vshrl.u32 1326507024, %v1029
      %v1045 = vor.u32 %v1043, %v1044
      %vm1046 = vcmp.lt.s32.totalorder %v1027, 1
      %vm1047 = vcmp.lt.s32.totalorder %v1027, 2
      %vm1048 = vcmp.lt.s32.totalorder %v1027, 3
      %vm1049 = vcmp.lt.s32.totalorder %v1027, 4
      %v1050 = vsel %vm1046, %v1030, %v1033
      %v1051 = vsel %vm1049, %v1039, 2102212464
      %v1052 = vsel %vm1048, %v1036, %v1051
      %v1053 = vsel %vm1047, %v1050, %v1052
      %v1054 = vsel %vm1046, %v1033, %v1036
      %v1055 = vsel %vm1049, %v1042, 920167782
      %v1056 = vsel %vm1048, %v1039, %v1055
      %v1057 = vsel %vm1047, %v1054, %v1056
      %v1058 = vsel %vm1046, %v1036, %v1039
      %v1059 = vsel %vm1049, %v1045, 1326507024
      %v1060 = vsel %vm1048, %v1042, %v1059
      %v1061 = vsel %vm1047, %v1058, %v1060
      %v1062 = vshll.u32 %v1022, 8
      %v1063 = vmul.u32.u64.compose %v1062, %v1061
      %v1064 = vextract.low.u32 %v1063
      %v1065 = vextract.high.u32 %v1063
      %v1066 = vmul.u32.u64.compose %v1062, %v1057
      %v1067 = vextract.low.u32 %v1066
      %v1068 = vextract.high.u32 %v1066
      %v1069 = vmul.u32 %v1062, %v1053
      %v1070 = vadd.s32 %v1065, %v1067
      %vm1071 = vc.u32 %v1065, %v1067
      %v1072 = vadd.s32 %v1068, 1
      %v1073 = vsel %vm1071, %v1072, %v1068
      %v1074 = vadd.s32 %v1069, %v1073
      %v1075 = vadd.s32 %v1074, 536870912
      %v1076 = vshrl.u32 %v1075, 30
      %v1077 = vshll.u32 %v1076, 30
      %v1078 = vsub.s32 %v1074, %v1077
      %vm1079 = vcmp.lt.s32.totalorder %v1078, 0
      %v1080 = vsub.s32 0, %v1078
      %v1081 = vsel %vm1079, %v1080, %v1078
      %v1082 = vclz %v1081
      %v1083 = vsub.s32 %v1082, 2
      %vm1084 = vcmp.gt.s32.totalorder 0, %v1083
      %v1085 = vsel %vm1084, 0, %v1083
      %v1086 = vsub.s32 32, %v1085
      %v1087 = vshll.u32 %v1078, %v1085
      %v1088 = vshrl.u32 %v1070, %v1086
      %v1089 = vor.u32 %v1087, %v1088
      %v1090 = vsub.s32 4294967266, %v1085
      %v1091 = vadd.s32 %v1090, 127
      %v1092 = vshll.u32 %v1091, 23
      %v1093 = vor.u32 4788187, %v1092
      %v1094 = vand.u32 2147483647, %v1093
      %v1096 = vcvt.s32.f32 %v1089
      %v1097 = vmul.f32 %v1096, %v1094
      %v1098 = vxor.u32 %v1097, 2147483648
      %v1099 = vsel %vm1016, %v1098, %v1097
      %v1100 = vsub.s32 4, %v1076
      %v1101 = vsel %vm1016, %v1100, %v1076
      %v1102 = vsel %vm1015, %v1004, %v1099
      %v1103 = vsel %vm1015, 0, %v1101
      %v1104 = vcosq.f32.pop %v1102
      %v1105 = vsinq.f32.pop %v1102
      %vm1106 = vweird.f32 %v1004
      %v1107 = vadd.s32 %v1103, 3
      %v1108 = vand.u32 %v1107, 3
      %vm1109 = vcmp.lt.s32.totalorder %v1108, 2
      %vm1110 = vcmp.eq.s32.totalorder %v1108, 0
      %v1111 = vxor.u32 %v1105, 2147483648
      %v1112 = vsel %vm1110, %v1104, %v1111
      %vm1113 = vcmp.eq.s32.totalorder %v1108, 2
      %v1114 = vxor.u32 %v1104, 2147483648
      %v1115 = vsel %vm1113, %v1114, %v1105
      %v1116 = vsel %vm1109, %v1112, %v1115
      %v1117 = vsel %vm1106, nan, %v1116
      %v1118 = vand.u32 2147483647, %v1006
      %vm1119 = vcmp.le.f32.partialorder %v1118, 0.7853982
      %vm1120 = vcmp.lt.s32.totalorder %v1006, 0
      %v1121 = vand.u32 %v1006, 2139095040
      %v1122 = vshrl.u32 %v1121, 23
      %v1123 = vsub.s32 %v1122, 127
      %v1124 = vand.u32 2147483647, %v1006
      %v1125 = vand.u32 %v1124, 8388607
      %v1126 = vor.u32 %v1125, 8388608
      %v1127 = vsub.s32 0, %v1126
      %v1128 = vadd.s32 %v1123, 1
      %vm1129 = vcmp.gt.s32.totalorder %v1128, 0
      %v1130 = vsel %vm1129, %v1128, 0
      %v1131 = vshrl.u32 %v1130, 5
      %v1132 = vand.u32 %v1130, 31
      %v1133 = vsub.s32 32, %v1132
      %v1134 = vshrl.u32 683565275, %v1133
      %v1135 = vshll.u32 683565275, %v1132
      %v1136 = vshrl.u32 2475754826, %v1133
      %v1137 = vor.u32 %v1135, %v1136
      %v1138 = vshll.u32 2475754826, %v1132
      %v1139 = vshrl.u32 2131351028, %v1133
      %v1140 = vor.u32 %v1138, %v1139
      %v1141 = vshll.u32 2131351028, %v1132
      %v1142 = vshrl.u32 2102212464, %v1133
      %v1143 = vor.u32 %v1141, %v1142
      %v1144 = vshll.u32 2102212464, %v1132
      %v1145 = vshrl.u32 920167782, %v1133
      %v1146 = vor.u32 %v1144, %v1145
      %v1147 = vshll.u32 920167782, %v1132
      %v1148 = vshrl.u32 1326507024, %v1133
      %v1149 = vor.u32 %v1147, %v1148
      %vm1150 = vcmp.lt.s32.totalorder %v1131, 1
      %vm1151 = vcmp.lt.s32.totalorder %v1131, 2
      %vm1152 = vcmp.lt.s32.totalorder %v1131, 3
      %vm1153 = vcmp.lt.s32.totalorder %v1131, 4
      %v1154 = vsel %vm1150, %v1134, %v1137
      %v1155 = vsel %vm1153, %v1143, 2102212464
      %v1156 = vsel %vm1152, %v1140, %v1155
      %v1157 = vsel %vm1151, %v1154, %v1156
      %v1158 = vsel %vm1150, %v1137, %v1140
      %v1159 = vsel %vm1153, %v1146, 920167782
      %v1160 = vsel %vm1152, %v1143, %v1159
      %v1161 = vsel %vm1151, %v1158, %v1160
      %v1162 = vsel %vm1150, %v1140, %v1143
      %v1163 = vsel %vm1153, %v1149, 1326507024
      %v1164 = vsel %vm1152, %v1146, %v1163
      %v1165 = vsel %vm1151, %v1162, %v1164
      %v1166 = vshll.u32 %v1126, 8
      %v1167 = vmul.u32.u64.compose %v1166, %v1165
      %v1168 = vextract.low.u32 %v1167
      %v1169 = vextract.high.u32 %v1167
      %v1170 = vmul.u32.u64.compose %v1166, %v1161
      %v1171 = vextract.low.u32 %v1170
      %v1172 = vextract.high.u32 %v1170
      %v1173 = vmul.u32 %v1166, %v1157
      %v1174 = vadd.s32 %v1169, %v1171
      %vm1175 = vc.u32 %v1169, %v1171
      %v1176 = vadd.s32 %v1172, 1
      %v1177 = vsel %vm1175, %v1176, %v1172
      %v1178 = vadd.s32 %v1173, %v1177
      %v1179 = vadd.s32 %v1178, 536870912
      %v1180 = vshrl.u32 %v1179, 30
      %v1181 = vshll.u32 %v1180, 30
      %v1182 = vsub.s32 %v1178, %v1181
      %vm1183 = vcmp.lt.s32.totalorder %v1182, 0
      %v1184 = vsub.s32 0, %v1182
      %v1185 = vsel %vm1183, %v1184, %v1182
      %v1186 = vclz %v1185
      %v1187 = vsub.s32 %v1186, 2
      %vm1188 = vcmp.gt.s32.totalorder 0, %v1187
      %v1189 = vsel %vm1188, 0, %v1187
      %v1190 = vsub.s32 32, %v1189
      %v1191 = vshll.u32 %v1182, %v1189
      %v1192 = vshrl.u32 %v1174, %v1190
      %v1193 = vor.u32 %v1191, %v1192
      %v1194 = vsub.s32 4294967266, %v1189
      %v1195 = vadd.s32 %v1194, 127
      %v1196 = vshll.u32 %v1195, 23
      %v1197 = vor.u32 4788187, %v1196
      %v1198 = vand.u32 2147483647, %v1197
      %v1200 = vcvt.s32.f32 %v1193
      %v1201 = vmul.f32 %v1200, %v1198
      %v1202 = vxor.u32 %v1201, 2147483648
      %v1203 = vsel %vm1120, %v1202, %v1201
      %v1204 = vsub.s32 4, %v1180
      %v1205 = vsel %vm1120, %v1204, %v1180
      %v1206 = vsel %vm1119, %v1006, %v1203
      %v1207 = vsel %vm1119, 0, %v1205
      %v1208 = vcosq.f32.pop %v1206
      %v1209 = vsinq.f32.pop %v1206
      %vm1210 = vweird.f32 %v1006
      %v1211 = vadd.s32 %v1207, 3
      %v1212 = vand.u32 %v1211, 3
      %vm1213 = vcmp.lt.s32.totalorder %v1212, 2
      %vm1214 = vcmp.eq.s32.totalorder %v1212, 0
      %v1215 = vxor.u32 %v1209, 2147483648
      %v1216 = vsel %vm1214, %v1208, %v1215
      %vm1217 = vcmp.eq.s32.totalorder %v1212, 2
      %v1218 = vxor.u32 %v1208, 2147483648
      %v1219 = vsel %vm1217, %v1218, %v1209
      %v1220 = vsel %vm1213, %v1216, %v1219
      %v1221 = vsel %vm1210, nan, %v1220
      %v1222 = vand.u32 2147483647, %v1010
      %vm1223 = vcmp.le.f32.partialorder %v1222, 0.7853982
      %vm1224 = vcmp.lt.s32.totalorder %v1010, 0
      %v1225 = vand.u32 %v1010, 2139095040
      %v1226 = vshrl.u32 %v1225, 23
      %v1227 = vsub.s32 %v1226, 127
      %v1228 = vand.u32 2147483647, %v1010
      %v1229 = vand.u32 %v1228, 8388607
      %v1230 = vor.u32 %v1229, 8388608
      %v1231 = vsub.s32 0, %v1230
      %v1232 = vadd.s32 %v1227, 1
      %vm1233 = vcmp.gt.s32.totalorder %v1232, 0
      %v1234 = vsel %vm1233, %v1232, 0
      %v1235 = vshrl.u32 %v1234, 5
      %v1236 = vand.u32 %v1234, 31
      %v1237 = vsub.s32 32, %v1236
      %v1238 = vshrl.u32 683565275, %v1237
      %v1239 = vshll.u32 683565275, %v1236
      %v1240 = vshrl.u32 2475754826, %v1237
      %v1241 = vor.u32 %v1239, %v1240
      %v1242 = vshll.u32 2475754826, %v1236
      %v1243 = vshrl.u32 2131351028, %v1237
      %v1244 = vor.u32 %v1242, %v1243
      %v1245 = vshll.u32 2131351028, %v1236
      %v1246 = vshrl.u32 2102212464, %v1237
      %v1247 = vor.u32 %v1245, %v1246
      %v1248 = vshll.u32 2102212464, %v1236
      %v1249 = vshrl.u32 920167782, %v1237
      %v1250 = vor.u32 %v1248, %v1249
      %v1251 = vshll.u32 920167782, %v1236
      %v1252 = vshrl.u32 1326507024, %v1237
      %v1253 = vor.u32 %v1251, %v1252
      %vm1254 = vcmp.lt.s32.totalorder %v1235, 1
      %vm1255 = vcmp.lt.s32.totalorder %v1235, 2
      %vm1256 = vcmp.lt.s32.totalorder %v1235, 3
      %vm1257 = vcmp.lt.s32.totalorder %v1235, 4
      %v1258 = vsel %vm1254, %v1238, %v1241
      %v1259 = vsel %vm1257, %v1247, 2102212464
      %v1260 = vsel %vm1256, %v1244, %v1259
      %v1261 = vsel %vm1255, %v1258, %v1260
      %v1262 = vsel %vm1254, %v1241, %v1244
      %v1263 = vsel %vm1257, %v1250, 920167782
      %v1264 = vsel %vm1256, %v1247, %v1263
      %v1265 = vsel %vm1255, %v1262, %v1264
      %v1266 = vsel %vm1254, %v1244, %v1247
      %v1267 = vsel %vm1257, %v1253, 1326507024
      %v1268 = vsel %vm1256, %v1250, %v1267
      %v1269 = vsel %vm1255, %v1266, %v1268
      %v1270 = vshll.u32 %v1230, 8
      %v1271 = vmul.u32.u64.compose %v1270, %v1269
      %v1272 = vextract.low.u32 %v1271
      %v1273 = vextract.high.u32 %v1271
      %v1274 = vmul.u32.u64.compose %v1270, %v1265
      %v1275 = vextract.low.u32 %v1274
      %v1276 = vextract.high.u32 %v1274
      %v1277 = vmul.u32 %v1270, %v1261
      %v1278 = vadd.s32 %v1273, %v1275
      %vm1279 = vc.u32 %v1273, %v1275
      %v1280 = vadd.s32 %v1276, 1
      %v1281 = vsel %vm1279, %v1280, %v1276
      %v1282 = vadd.s32 %v1277, %v1281
      %v1283 = vadd.s32 %v1282, 536870912
      %v1284 = vshrl.u32 %v1283, 30
      %v1285 = vshll.u32 %v1284, 30
      %v1286 = vsub.s32 %v1282, %v1285
      %vm1287 = vcmp.lt.s32.totalorder %v1286, 0
      %v1288 = vsub.s32 0, %v1286
      %v1289 = vsel %vm1287, %v1288, %v1286
      %v1290 = vclz %v1289
      %v1291 = vsub.s32 %v1290, 2
      %vm1292 = vcmp.gt.s32.totalorder 0, %v1291
      %v1293 = vsel %vm1292, 0, %v1291
      %v1294 = vsub.s32 32, %v1293
      %v1295 = vshll.u32 %v1286, %v1293
      %v1296 = vshrl.u32 %v1278, %v1294
      %v1297 = vor.u32 %v1295, %v1296
      %v1298 = vsub.s32 4294967266, %v1293
      %v1299 = vadd.s32 %v1298, 127
      %v1300 = vshll.u32 %v1299, 23
      %v1301 = vor.u32 4788187, %v1300
      %v1302 = vand.u32 2147483647, %v1301
      %v1304 = vcvt.s32.f32 %v1297
      %v1305 = vmul.f32 %v1304, %v1302
      %v1306 = vxor.u32 %v1305, 2147483648
      %v1307 = vsel %vm1224, %v1306, %v1305
      %v1308 = vsub.s32 4, %v1284
      %v1309 = vsel %vm1224, %v1308, %v1284
      %v1310 = vsel %vm1223, %v1010, %v1307
      %v1311 = vsel %vm1223, 0, %v1309
      %v1312 = vcosq.f32.pop %v1310
      %v1313 = vsinq.f32.pop %v1310
      %vm1314 = vweird.f32 %v1010
      %v1315 = vadd.s32 %v1311, 3
      %v1316 = vand.u32 %v1315, 3
      %vm1317 = vcmp.lt.s32.totalorder %v1316, 2
      %vm1318 = vcmp.eq.s32.totalorder %v1316, 0
      %v1319 = vxor.u32 %v1313, 2147483648
      %v1320 = vsel %vm1318, %v1312, %v1319
      %vm1321 = vcmp.eq.s32.totalorder %v1316, 2
      %v1322 = vxor.u32 %v1312, 2147483648
      %v1323 = vsel %vm1321, %v1322, %v1313
      %v1324 = vsel %vm1317, %v1320, %v1323
      %v1325 = vsel %vm1314, nan, %v1324
      %v1326 = vand.u32 2147483647, %v1012
      %vm1327 = vcmp.le.f32.partialorder %v1326, 0.7853982
      %vm1328 = vcmp.lt.s32.totalorder %v1012, 0
      %v1329 = vand.u32 %v1012, 2139095040
      %v1330 = vshrl.u32 %v1329, 23
      %v1331 = vsub.s32 %v1330, 127
      %v1332 = vand.u32 2147483647, %v1012
      %v1333 = vand.u32 %v1332, 8388607
      %v1334 = vor.u32 %v1333, 8388608
      %v1335 = vsub.s32 0, %v1334
      %v1336 = vadd.s32 %v1331, 1
      %vm1337 = vcmp.gt.s32.totalorder %v1336, 0
      %v1338 = vsel %vm1337, %v1336, 0
      %v1339 = vshrl.u32 %v1338, 5
      %v1340 = vand.u32 %v1338, 31
      %v1341 = vsub.s32 32, %v1340
      %v1342 = vshrl.u32 683565275, %v1341
      %v1343 = vshll.u32 683565275, %v1340
      %v1344 = vshrl.u32 2475754826, %v1341
      %v1345 = vor.u32 %v1343, %v1344
      %v1346 = vshll.u32 2475754826, %v1340
      %v1347 = vshrl.u32 2131351028, %v1341
      %v1348 = vor.u32 %v1346, %v1347
      %v1349 = vshll.u32 2131351028, %v1340
      %v1350 = vshrl.u32 2102212464, %v1341
      %v1351 = vor.u32 %v1349, %v1350
      %v1352 = vshll.u32 2102212464, %v1340
      %v1353 = vshrl.u32 920167782, %v1341
      %v1354 = vor.u32 %v1352, %v1353
      %v1355 = vshll.u32 920167782, %v1340
      %v1356 = vshrl.u32 1326507024, %v1341
      %v1357 = vor.u32 %v1355, %v1356
      %vm1358 = vcmp.lt.s32.totalorder %v1339, 1
      %vm1359 = vcmp.lt.s32.totalorder %v1339, 2
      %vm1360 = vcmp.lt.s32.totalorder %v1339, 3
      %vm1361 = vcmp.lt.s32.totalorder %v1339, 4
      %v1362 = vsel %vm1358, %v1342, %v1345
      %v1363 = vsel %vm1361, %v1351, 2102212464
      %v1364 = vsel %vm1360, %v1348, %v1363
      %v1365 = vsel %vm1359, %v1362, %v1364
      %v1366 = vsel %vm1358, %v1345, %v1348
      %v1367 = vsel %vm1361, %v1354, 920167782
      %v1368 = vsel %vm1360, %v1351, %v1367
      %v1369 = vsel %vm1359, %v1366, %v1368
      %v1370 = vsel %vm1358, %v1348, %v1351
      %v1371 = vsel %vm1361, %v1357, 1326507024
      %v1372 = vsel %vm1360, %v1354, %v1371
      %v1373 = vsel %vm1359, %v1370, %v1372
      %v1374 = vshll.u32 %v1334, 8
      %v1375 = vmul.u32.u64.compose %v1374, %v1373
      %v1376 = vextract.low.u32 %v1375
      %v1377 = vextract.high.u32 %v1375
      %v1378 = vmul.u32.u64.compose %v1374, %v1369
      %v1379 = vextract.low.u32 %v1378
      %v1380 = vextract.high.u32 %v1378
      %v1381 = vmul.u32 %v1374, %v1365
      %v1382 = vadd.s32 %v1377, %v1379
      %vm1383 = vc.u32 %v1377, %v1379
      %v1384 = vadd.s32 %v1380, 1
      %v1385 = vsel %vm1383, %v1384, %v1380
      %v1386 = vadd.s32 %v1381, %v1385
      %v1387 = vadd.s32 %v1386, 536870912
      %v1388 = vshrl.u32 %v1387, 30
      %v1389 = vshll.u32 %v1388, 30
      %v1390 = vsub.s32 %v1386, %v1389
      %vm1391 = vcmp.lt.s32.totalorder %v1390, 0
      %v1392 = vsub.s32 0, %v1390
      %v1393 = vsel %vm1391, %v1392, %v1390
      %v1394 = vclz %v1393
      %v1395 = vsub.s32 %v1394, 2
      %vm1396 = vcmp.gt.s32.totalorder 0, %v1395
      %v1397 = vsel %vm1396, 0, %v1395
      %v1398 = vsub.s32 32, %v1397
      %v1399 = vshll.u32 %v1390, %v1397
      %v1400 = vshrl.u32 %v1382, %v1398
      %v1401 = vor.u32 %v1399, %v1400
      %v1402 = vsub.s32 4294967266, %v1397
      %v1403 = vadd.s32 %v1402, 127
      %v1404 = vshll.u32 %v1403, 23
      %v1405 = vor.u32 4788187, %v1404
      %v1406 = vand.u32 2147483647, %v1405
      %v1408 = vcvt.s32.f32 %v1401
      %v1409 = vmul.f32 %v1408, %v1406
      %v1410 = vxor.u32 %v1409, 2147483648
      %v1411 = vsel %vm1328, %v1410, %v1409
      %v1412 = vsub.s32 4, %v1388
      %v1413 = vsel %vm1328, %v1412, %v1388
      %v1414 = vsel %vm1327, %v1012, %v1411
      %v1415 = vsel %vm1327, 0, %v1413
      %v1416 = vcosq.f32.pop %v1414
      %v1417 = vsinq.f32.pop %v1414
      %vm1418 = vweird.f32 %v1012
      %v1419 = vadd.s32 %v1415, 3
      %v1420 = vand.u32 %v1419, 3
      %vm1421 = vcmp.lt.s32.totalorder %v1420, 2
      %vm1422 = vcmp.eq.s32.totalorder %v1420, 0
      %v1423 = vxor.u32 %v1417, 2147483648
      %v1424 = vsel %vm1422, %v1416, %v1423
      %vm1425 = vcmp.eq.s32.totalorder %v1420, 2
      %v1426 = vxor.u32 %v1416, 2147483648
      %v1427 = vsel %vm1425, %v1426, %v1417
      %v1428 = vsel %vm1421, %v1424, %v1427
      %v1429 = vsel %vm1418, nan, %v1428
      %1430 = vst [vmem:[%s197] sm:$0xff] %v1117
      %1431 = vst [vmem:[%s197 + $0x8] sm:$0xff] %v1221
      %1432 = vst [vmem:[%s197 + $0x10] sm:$0xff] %v1325
      %1433 = vst [vmem:[%s197 + $0x18] sm:$0xff] %v1429
      %p1434 = scmp.lt.s32.totalorder %s15, 1
      %s1435 = scalar_select %p1434, %s15, 1
      %s1436 = smul.addr %s1435, 4
      %s1437 = smul.addr %s1436, 8
      %s1438 = scalar_lea.vmem %s4, %s1437
      // Predicated region
      $region37: #{physical_model_forward.1} parent=35 // pred_check
        %p1439 = pneg %p122
      $region38: #{physical_model_forward.1} parent=35 // pred_check_branch
        %1441 = sbr.rel (%p1439) target = $region40
      $region39: #{physical_model_forward.1} parent=35 // pred_region
        _
      $region40: #{physical_model_forward.1} parent=35 // pred_fallthru
        _
    $region36: #{physical_model_forward.1} parent=5 // pred_fallthru
      _
    %p1442 = scmp.le.s32.totalorder 2, %s10
    // Predicated region
    $region41: #{physical_model_forward.1} parent=5 // pred_check
      %p1443 = pneg %p1442
    $region42: #{physical_model_forward.1} parent=5 // pred_check_branch
      %1445 = sbr.rel (%p1443) target = $region44
    $region43: #{physical_model_forward.1} parent=5 // pred_region
      %s1446 = ssub.s32 %s10, 2
      // Predicated region
      $region45: #{physical_model_forward.1} parent=43 // pred_check
        %p1447 = pneg %p128
      $region46: #{physical_model_forward.1} parent=43 // pred_check_branch
        %1449 = sbr.rel (%p1447) target = $region48
      $region47: #{physical_model_forward.1} parent=43 // pred_region
        %p1450 = scmp.lt.s32.totalorder %s16, 1
        %s1451 = scalar_select %p1450, %s16, 1
        %s1452 = smul.addr %s1451, 4
        %s1453 = smul.addr %s1452, 8
        %s1454 = scalar_lea.vmem %s4, %s1453
      $region48: #{physical_model_forward.1} parent=43 // pred_fallthru
        _
    $region44: #{physical_model_forward.1} parent=5 // pred_fallthru
      _
  $region6: #{physical_model_forward.1} parent=0 // loop_footer
    %s14 = sadd.s32 1, %s10
  $region7: #{physical_model_forward.1} parent=0 // loop_footer_branch
    %9 = sbr.rel target = $region3
  $region8: #{physical_model_forward.1} parent=0 // loop_exit
    _

</llo_original>
